<compile_context>
chip_gen: v6e
topology: v6e:2x2x1
jax: 0.10.0
libtpu: 0.0.40
codegen_flags: <defaults>
</compile_context>

<pallas_src>
import functools

import numpy as np
import jax
import jax.numpy as jnp
from jax import lax
from jax.experimental import pallas as pl
from jax.experimental.pallas import tpu as pltpu


def _gcn_kernel(x_ref, thw_ref, thb_ref, phw_ref, phb_ref, gw_ref,
                gamma_ref, beta_ref, out_ref, rel_ref, *,
                approx_recip, ng_unroll):
    tile_b, n, nfg = x_ref.shape            # (TILE_B, N, NFG)
    ng, _, nfr = thw_ref.shape              # (NG, NFG, NFR)
    mm_dtype = thw_ref.dtype                # matmul operand dtype (pre-cast in wrapper)

    x_blk = x_ref[...]                              # [TILE_B, N, NFG]  mm_dtype
    x_flat = x_blk.reshape(tile_b * n, nfg)         # major-dim collapse only (layout-free)

    def body(g, carry):
        acc, _ = carry
        thw = thw_ref[g]                            # [NFG, NFR]  (pre-scaled by 1/sqrt(NFR))
        phw = phw_ref[g]                            # [NFG, NFR]
        gw = gw_ref[g]                              # [NFG, NFG]
        thb = thb_ref[g]                            # [1, NFR] f32 (pre-scaled)
        phb = phb_ref[g]                            # [1, NFR] f32
        gamma = gamma_ref[g]                        # [1, NFG] f32
        beta = beta_ref[g]                          # [1, NFG] f32

        # Linear projections on the flattened [TILE_B*N, NFG] operand (fat MXU M dim).
        theta = jnp.dot(x_flat, thw, preferred_element_type=jnp.float32) + thb   # [M, NFR]
        phi = jnp.dot(x_flat, phw, preferred_element_type=jnp.float32) + phb     # [M, NFR]

        # sim[b, n, m] = sum_r theta[b, n, r] * phi[b, m, r]; contract last dims so
        # Mosaic feeds phi directly as the transposed RHS (no materialized phi.T).
        sim = lax.dot_general(
            theta.reshape(tile_b, n, nfr).astype(mm_dtype),
            phi.reshape(tile_b, n, nfr).astype(mm_dtype),
            dimension_numbers=(((2,), (2,)), ((0,), (0,))),
            preferred_element_type=jnp.float32)                                  # [TILE_B, N, N]

        # softmax over the last axis (f32).
        m = jnp.max(sim, axis=-1, keepdims=True)
        e = jnp.exp(sim - m)
        rel = e * pl.reciprocal(jnp.sum(e, axis=-1, keepdims=True),
                                approx=approx_recip)                             # [TILE_B, N, N]

        # graph convolution: (rel @ x) @ W_gcn   (no bias)
        agg = lax.dot_general(
            rel.astype(mm_dtype), x_blk,
            dimension_numbers=(((2,), (1,)), ((0,), (0,))),
            preferred_element_type=jnp.float32)                                  # [TILE_B, N, NFG]
        one = jnp.dot(agg.reshape(tile_b * n, nfg).astype(mm_dtype), gw,
                      preferred_element_type=jnp.float32)                        # [M, NFG]

        # LayerNorm over feature dim (eps=1e-5, nn.LayerNorm default), then ReLU (f32).
        mean = jnp.mean(one, axis=-1, keepdims=True)
        cen = one - mean
        var = jnp.mean(cen * cen, axis=-1, keepdims=True)
        y = cen * lax.rsqrt(var + jnp.float32(1e-5)) * gamma + beta
        return acc + jnp.maximum(y, jnp.float32(0.0)), rel

    acc0 = jnp.zeros((tile_b * n, nfg), jnp.float32)
    rel0 = jnp.zeros((tile_b, n, n), jnp.float32)
    acc, rel_last = lax.fori_loop(0, ng, body, (acc0, rel0), unroll=ng_unroll)

    out_ref[...] = acc.reshape(tile_b, n, nfg).astype(out_ref.dtype)
    rel_ref[...] = rel_last.astype(rel_ref.dtype)       # last graph's relation matrix


def _choose_tile_b(B, N, target_rows=256):
    """Largest divisor of B with TILE_B*N <= target_rows, keeping >=2 grid steps when B>=2."""
    best = 1
    for t in range(1, B + 1):
        if B % t != 0:
            continue
        if B >= 2 and (B // t) < 2:
            continue                       # keep the batch axis splittable across v7x's 2 TCs
        if t * N <= max(target_rows, N):
            best = t
    return best


def gcn_module_forward(x, params, *, matmul_dtype=jnp.bfloat16,
                       approx_reciprocal=True, tile_b=None, ng_unroll=True):
    """x: [B, N, NFG] float32. params: dict of stacked per-graph weights.

    matmul_dtype=bf16 + approx_reciprocal=True is the fast path (f32 accumulation,
    softmax / LayerNorm math in f32).  Note: on the fast path relation_graph rows
    sum to 1 only approximately (bf16 logits + EUP approx reciprocal); pass
    (jnp.float32, False) if it is consumed downstream as an exact probability
    matrix or for bit-faithful verification.  ng_unroll controls the NG-loop
    unrolling (set to 1/False at production NFG to bound live ranges).
    """
    B, N, NFG = x.shape
    NG, _, NFR = params["theta_w"].shape

    # Fold the constant 1/sqrt(NFR) similarity scale into the theta projection:
    # (x @ (W/s) + b/s) @ phi^T == ((x @ W + b) @ phi^T) / s
    inv_sqrt_nfr = np.float32(1.0 / np.sqrt(NFR))
    theta_w = (params["theta_w"] * inv_sqrt_nfr).astype(matmul_dtype)      # pre-cast: half DMA
    phi_w = params["phi_w"].astype(matmul_dtype)
    gcn_w = params["gcn_w"].astype(matmul_dtype)
    x_mm = x.astype(matmul_dtype)
    theta_b = (params["theta_b"] * inv_sqrt_nfr).reshape(NG, 1, NFR).astype(jnp.float32)
    phi_b = params["phi_b"].reshape(NG, 1, NFR).astype(jnp.float32)
    gamma = params["ln_gamma"].reshape(NG, 1, NFG).astype(jnp.float32)
    beta = params["ln_beta"].reshape(NG, 1, NFG).astype(jnp.float32)

    if tile_b is None:
        tile_b = _choose_tile_b(B, N)
    assert B % tile_b == 0, "tile_b must divide B"
    num_tiles = B // tile_b

    # --- VMEM budgeting (Buffered(1) weights counted ONCE at their real itemsize;
    #     only the per-step x/out/rel blocks are double-buffered). ---
    w_item = jnp.dtype(matmul_dtype).itemsize
    weight_bytes = (2 * NG * NFG * NFR + NG * NFG * NFG) * w_item
    bias_bytes = (2 * NG * NFR + 2 * NG * NFG) * 4
    block_bytes = 2 * (tile_b * N * NFG * w_item            # x block (double-buffered)
                       + tile_b * N * NFG * 4               # out block
                       + tile_b * N * N * 4)                # rel block
    vmem_needed = weight_bytes + bias_bytes + block_bytes + (2 << 20)   # + scratch slack
    try:
        vmem_cap = int(pltpu.get_tpu_info().vmem_capacity_bytes)   # 64 MiB/TC on v7x, 128 MiB v5e/v6e
    except Exception:
        vmem_cap = 64 * 2 ** 20                                      # conservative fallback
    vmem_limit = int(min(vmem_cap - 8 * 2 ** 20, max(32 * 2 ** 20, vmem_needed)))

    # Advisory cost estimate so XLA schedules around this custom call sensibly.
    flops = B * NG * (4 * N * NFG * NFR + 2 * N * N * NFR
                      + 2 * N * N * NFG + 2 * N * NFG * NFG)
    cost = pl.CostEstimate(
        flops=int(flops),
        transcendentals=int(B * NG * N * N),
        bytes_accessed=int(B * N * NFG * w_item + weight_bytes + bias_bytes
                           + B * N * NFG * 4 + B * N * N * 4),
    )

    def _const_spec(shape):
        # Constant index_map across the grid -> DMA'd once; single-buffered (no waste).
        zeros = (0,) * len(shape)
        return pl.BlockSpec(shape, lambda b, _z=zeros: _z, pipeline_mode=pl.Buffered(1))

    kernel = functools.partial(_gcn_kernel, approx_recip=approx_reciprocal,
                               ng_unroll=ng_unroll)

    out_features, relation_graph = pl.pallas_call(
        kernel,
        out_shape=(
            jax.ShapeDtypeStruct((B, N, NFG), jnp.float32),
            jax.ShapeDtypeStruct((B, N, N), jnp.float32),
        ),
        grid_spec=pltpu.PrefetchScalarGridSpec(
            num_scalar_prefetch=0,
            grid=(num_tiles,),
            in_specs=[
                pl.BlockSpec((tile_b, N, NFG), lambda b: (b, 0, 0)),   # x (per batch-tile)
                _const_spec((NG, NFG, NFR)),                           # theta_w (bf16, once)
                _const_spec((NG, 1, NFR)),                             # theta_b (f32)
                _const_spec((NG, NFG, NFR)),                           # phi_w
                _const_spec((NG, 1, NFR)),                             # phi_b
                _const_spec((NG, NFG, NFG)),                           # gcn_w
                _const_spec((NG, 1, NFG)),                             # ln_gamma
                _const_spec((NG, 1, NFG)),                             # ln_beta
            ],
            out_specs=[
                pl.BlockSpec((tile_b, N, NFG), lambda b: (b, 0, 0)),   # summed features
                pl.BlockSpec((tile_b, N, N), lambda b: (b, 0, 0)),     # relation graph (last g)
            ],
        ),
        compiler_params=pltpu.CompilerParams(
            dimension_semantics=("parallel",),     # batch-tile axis -> megacore on v7x
            vmem_limit_bytes=vmem_limit,
        ),
        cost_estimate=cost,
    )(x_mm, theta_w, theta_b, phi_w, phi_b, gcn_w, gamma, beta)

    return out_features, relation_graph


def init_params(key, NG, NFG, NFR):
    """Deterministic init matching the shapes of nn.Linear / nn.LayerNorm."""
    keys = jax.random.split(key, 6)
    lin_bound = 1.0 / np.sqrt(NFG)  # PyTorch Linear default: U(-1/sqrt(fan_in), ...)
    params = {
        # nn.Linear stores weight as [out, in]; we store transposed [in, out] for x @ W
        "theta_w": jax.random.uniform(keys[0], (NG, NFG, NFR), jnp.float32,
                                      -lin_bound, lin_bound),
        "theta_b": jax.random.uniform(keys[1], (NG, NFR), jnp.float32,
                                      -lin_bound, lin_bound),
        "phi_w": jax.random.uniform(keys[2], (NG, NFG, NFR), jnp.float32,
                                    -lin_bound, lin_bound),
        "phi_b": jax.random.uniform(keys[3], (NG, NFR), jnp.float32,
                                    -lin_bound, lin_bound),
        "gcn_w": jax.random.uniform(keys[4], (NG, NFG, NFG), jnp.float32,
                                    -lin_bound, lin_bound),
        "ln_gamma": jnp.ones((NG, NFG), jnp.float32),
        "ln_beta": jnp.zeros((NG, NFG), jnp.float32),
    }
    return params


def reference_forward(x, params):
    """Plain-JAX f32 reference mirroring the PyTorch forward."""
    B, N, NFG = x.shape
    NG, _, NFR = params["theta_w"].shape
    acc = jnp.zeros((B, N, NFG), jnp.float32)
    rel_last = None
    for i in range(NG):
        theta = x @ params["theta_w"][i] + params["theta_b"][i]
        phi = x @ params["phi_w"][i] + params["phi_b"][i]
        sim = jnp.einsum("bnr,bmr->bnm", theta, phi) / np.sqrt(NFR)
        rel = jax.nn.softmax(sim, axis=2)
        rel_last = rel
        one = jnp.einsum("bnm,bmf->bnf", rel, x) @ params["gcn_w"][i]
        mean = one.mean(-1, keepdims=True)
        var = ((one - mean) ** 2).mean(-1, keepdims=True)
        one = (one - mean) / jnp.sqrt(var + 1e-5)
        one = one * params["ln_gamma"][i] + params["ln_beta"][i]
        acc = acc + jnp.maximum(one, 0.0)
    return acc, rel_last


if __name__ == "__main__":
    B, N = 2, 8
    NFR, NG, NFG = 32, 4, 32

    key = jax.random.PRNGKey(0)
    k_x, k_p = jax.random.split(key)
    x = jax.random.normal(k_x, (B, N, NFG), jnp.float32)
    params = init_params(k_p, NG, NFG, NFR)

    ref_out, ref_rel = reference_forward(x, params)

    # Exact path: f32 MXU operands + exact reciprocal -> tight tolerance.
    out, rel = gcn_module_forward(x, params, matmul_dtype=jnp.float32,
                                  approx_reciprocal=False)
    out = jax.block_until_ready(out)
    rel = jax.block_until_ready(rel)
    np.testing.assert_allclose(np.asarray(out), np.asarray(ref_out), rtol=2e-4, atol=2e-4)
    np.testing.assert_allclose(np.asarray(rel), np.asarray(ref_rel), rtol=2e-4, atol=2e-4)

    # Fast path: bf16 MXU operands (f32 accumulation) + EUP approx reciprocal.
    out_bf, rel_bf = gcn_module_forward(x, params)     # defaults = fast path
    out_bf = jax.block_until_ready(out_bf)
    rel_bf = jax.block_until_ready(rel_bf)
    np.testing.assert_allclose(np.asarray(out_bf), np.asarray(ref_out), rtol=1e-1, atol=1e-1)
    np.testing.assert_allclose(np.asarray(rel_bf), np.asarray(ref_rel), rtol=1e-1, atol=1e-1)

    print("KERNEL_OK")
</pallas_src>

<mosaic_0001>
module attributes {stable_mosaic.version = 11 : i64} {
  func.func @_gcn_kernel(%arg0: i32, %arg1: memref<1x8x32xf32, #tpu.memory_space<vmem>>, %arg2: memref<4x32x32xf32, #tpu.memory_space<vmem>>, %arg3: memref<4x1x32xf32, #tpu.memory_space<vmem>>, %arg4: memref<4x32x32xf32, #tpu.memory_space<vmem>>, %arg5: memref<4x1x32xf32, #tpu.memory_space<vmem>>, %arg6: memref<4x32x32xf32, #tpu.memory_space<vmem>>, %arg7: memref<4x1x32xf32, #tpu.memory_space<vmem>>, %arg8: memref<4x1x32xf32, #tpu.memory_space<vmem>>, %arg9: memref<1x8x32xf32, #tpu.memory_space<vmem>>, %arg10: memref<1x8x8xf32, #tpu.memory_space<vmem>>) attributes {dimension_semantics = [#tpu.dimension_semantics<parallel>], iteration_bounds = array<i64: 2>, scalar_prefetch = 0 : i64, scratch_operands = 0 : i64, tpu.core_type = #tpu.core_type<tc>, window_params = [{transform_indices = @transform_0, window_bounds = array<i64: 1, 8, 32>}, {pipeline_mode = #tpu.pipeline_mode<synchronous>, transform_indices = @transform_1, window_bounds = array<i64: 4, 32, 32>}, {pipeline_mode = #tpu.pipeline_mode<synchronous>, transform_indices = @transform_2, window_bounds = array<i64: 4, 1, 32>}, {pipeline_mode = #tpu.pipeline_mode<synchronous>, transform_indices = @transform_3, window_bounds = array<i64: 4, 32, 32>}, {pipeline_mode = #tpu.pipeline_mode<synchronous>, transform_indices = @transform_4, window_bounds = array<i64: 4, 1, 32>}, {pipeline_mode = #tpu.pipeline_mode<synchronous>, transform_indices = @transform_5, window_bounds = array<i64: 4, 32, 32>}, {pipeline_mode = #tpu.pipeline_mode<synchronous>, transform_indices = @transform_6, window_bounds = array<i64: 4, 1, 32>}, {pipeline_mode = #tpu.pipeline_mode<synchronous>, transform_indices = @transform_7, window_bounds = array<i64: 4, 1, 32>}, {transform_indices = @transform_8, window_bounds = array<i64: 1, 8, 32>}, {transform_indices = @transform_9, window_bounds = array<i64: 1, 8, 8>}]} {
    %c0 = arith.constant 0 : index
    %c0_0 = arith.constant 0 : index
    %c0_1 = arith.constant 0 : index
    %0 = vector.load %arg1[%c0, %c0_0, %c0_1] : memref<1x8x32xf32, #tpu.memory_space<vmem>>, vector<1x8x32xf32>
    %1 = vector.shape_cast %0 : vector<1x8x32xf32> to vector<8x32xf32>
    %cst = arith.constant 0.000000e+00 : f32
    %2 = vector.broadcast %cst : f32 to vector<8x32xf32>
    %cst_2 = arith.constant 0.000000e+00 : f32
    %3 = vector.broadcast %cst_2 : f32 to vector<1x8x8xf32>
    %c0_i32 = arith.constant 0 : i32
    %4 = arith.index_cast %c0_i32 : i32 to index
    %c0_3 = arith.constant 0 : index
    %c0_4 = arith.constant 0 : index
    %5 = vector.load %arg2[%4, %c0_3, %c0_4] : memref<4x32x32xf32, #tpu.memory_space<vmem>>, vector<1x32x32xf32>
    %6 = vector.shape_cast %5 : vector<1x32x32xf32> to vector<32x32xf32>
    %7 = arith.index_cast %c0_i32 : i32 to index
    %c0_5 = arith.constant 0 : index
    %c0_6 = arith.constant 0 : index
    %8 = vector.load %arg4[%7, %c0_5, %c0_6] : memref<4x32x32xf32, #tpu.memory_space<vmem>>, vector<1x32x32xf32>
    %9 = vector.shape_cast %8 : vector<1x32x32xf32> to vector<32x32xf32>
    %10 = arith.index_cast %c0_i32 : i32 to index
    %c0_7 = arith.constant 0 : index
    %c0_8 = arith.constant 0 : index
    %11 = vector.load %arg6[%10, %c0_7, %c0_8] : memref<4x32x32xf32, #tpu.memory_space<vmem>>, vector<1x32x32xf32>
    %12 = vector.shape_cast %11 : vector<1x32x32xf32> to vector<32x32xf32>
    %13 = arith.index_cast %c0_i32 : i32 to index
    %c0_9 = arith.constant 0 : index
    %c0_10 = arith.constant 0 : index
    %14 = vector.load %arg3[%13, %c0_9, %c0_10] : memref<4x1x32xf32, #tpu.memory_space<vmem>>, vector<1x1x32xf32>
    %15 = vector.shape_cast %14 : vector<1x1x32xf32> to vector<1x32xf32>
    %16 = arith.index_cast %c0_i32 : i32 to index
    %c0_11 = arith.constant 0 : index
    %c0_12 = arith.constant 0 : index
    %17 = vector.load %arg5[%16, %c0_11, %c0_12] : memref<4x1x32xf32, #tpu.memory_space<vmem>>, vector<1x1x32xf32>
    %18 = vector.shape_cast %17 : vector<1x1x32xf32> to vector<1x32xf32>
    %19 = arith.index_cast %c0_i32 : i32 to index
    %c0_13 = arith.constant 0 : index
    %c0_14 = arith.constant 0 : index
    %20 = vector.load %arg7[%19, %c0_13, %c0_14] : memref<4x1x32xf32, #tpu.memory_space<vmem>>, vector<1x1x32xf32>
    %21 = vector.shape_cast %20 : vector<1x1x32xf32> to vector<1x32xf32>
    %22 = arith.index_cast %c0_i32 : i32 to index
    %c0_15 = arith.constant 0 : index
    %c0_16 = arith.constant 0 : index
    %23 = vector.load %arg8[%22, %c0_15, %c0_16] : memref<4x1x32xf32, #tpu.memory_space<vmem>>, vector<1x1x32xf32>
    %24 = vector.shape_cast %23 : vector<1x1x32xf32> to vector<1x32xf32>
    %cst_17 = arith.constant dense<0.000000e+00> : vector<8x32xf32>
    %25 = tpu.matmul %1, %6, %cst_17 {dimension_numbers = #tpu.dot_dimension_numbers<[1], [0], [0], [1], [0, 0, 1, 1], [], []>} : vector<8x32xf32>, vector<32x32xf32>, vector<8x32xf32> -> vector<8x32xf32>
    %26 = vector.broadcast %15 : vector<1x32xf32> to vector<8x32xf32>
    %27 = arith.addf %25, %26 : vector<8x32xf32>
    %cst_18 = arith.constant dense<0.000000e+00> : vector<8x32xf32>
    %28 = tpu.matmul %1, %9, %cst_18 {dimension_numbers = #tpu.dot_dimension_numbers<[1], [0], [0], [1], [0, 0, 1, 1], [], []>} : vector<8x32xf32>, vector<32x32xf32>, vector<8x32xf32> -> vector<8x32xf32>
    %29 = vector.broadcast %18 : vector<1x32xf32> to vector<8x32xf32>
    %30 = arith.addf %28, %29 : vector<8x32xf32>
    %31 = vector.shape_cast %27 : vector<8x32xf32> to vector<1x8x32xf32>
    %32 = vector.shape_cast %30 : vector<8x32xf32> to vector<1x8x32xf32>
    %cst_19 = arith.constant dense<0.000000e+00> : vector<1x8x8xf32>
    %33 = tpu.matmul %31, %32, %cst_19 {dimension_numbers = #tpu.dot_dimension_numbers<[2], [2], [1], [1], [0, 0, 0, 1, 1, 1], [0], [0]>} : vector<1x8x32xf32>, vector<1x8x32xf32>, vector<1x8x8xf32> -> vector<1x8x8xf32>
    %cst_20 = arith.constant dense<0xFF800000> : vector<1x8xf32>
    %34 = vector.multi_reduction <maximumf>, %33, %cst_20 [2] : vector<1x8x8xf32> to vector<1x8xf32>
    %35 = vector.shape_cast %34 : vector<1x8xf32> to vector<1x8x1xf32>
    %36 = vector.broadcast %35 : vector<1x8x1xf32> to vector<1x8x8xf32>
    %37 = arith.subf %33, %36 : vector<1x8x8xf32>
    %38 = math.exp %37 : vector<1x8x8xf32>
    %cst_21 = arith.constant dense<0.000000e+00> : vector<1x8xf32>
    %39 = vector.multi_reduction <add>, %38, %cst_21 [2] : vector<1x8x8xf32> to vector<1x8xf32>
    %40 = vector.shape_cast %39 : vector<1x8xf32> to vector<1x8x1xf32>
    %41 = tpu.reciprocal %40 : vector<1x8x1xf32> -> vector<1x8x1xf32>
    %42 = vector.broadcast %41 : vector<1x8x1xf32> to vector<1x8x8xf32>
    %43 = arith.mulf %38, %42 : vector<1x8x8xf32>
    %cst_22 = arith.constant dense<0.000000e+00> : vector<1x8x32xf32>
    %44 = tpu.matmul %43, %0, %cst_22 {dimension_numbers = #tpu.dot_dimension_numbers<[2], [1], [1], [2], [0, 0, 0, 1, 1, 2], [0], [0]>} : vector<1x8x8xf32>, vector<1x8x32xf32>, vector<1x8x32xf32> -> vector<1x8x32xf32>
    %45 = vector.shape_cast %44 : vector<1x8x32xf32> to vector<8x32xf32>
    %cst_23 = arith.constant dense<0.000000e+00> : vector<8x32xf32>
    %46 = tpu.matmul %45, %12, %cst_23 {dimension_numbers = #tpu.dot_dimension_numbers<[1], [0], [0], [1], [0, 0, 1, 1], [], []>} : vector<8x32xf32>, vector<32x32xf32>, vector<8x32xf32> -> vector<8x32xf32>
    %cst_24 = arith.constant dense<0.000000e+00> : vector<8xf32>
    %47 = vector.multi_reduction <add>, %46, %cst_24 [1] : vector<8x32xf32> to vector<8xf32>
    %48 = vector.shape_cast %47 : vector<8xf32> to vector<8x1xf32>
    %cst_25 = arith.constant 3.200000e+01 : f32
    %49 = vector.broadcast %cst_25 : f32 to vector<8x1xf32>
    %50 = arith.divf %48, %49 : vector<8x1xf32>
    %51 = vector.broadcast %50 : vector<8x1xf32> to vector<8x32xf32>
    %52 = arith.subf %46, %51 : vector<8x32xf32>
    %53 = arith.mulf %52, %52 : vector<8x32xf32>
    %cst_26 = arith.constant dense<0.000000e+00> : vector<8xf32>
    %54 = vector.multi_reduction <add>, %53, %cst_26 [1] : vector<8x32xf32> to vector<8xf32>
    %55 = vector.shape_cast %54 : vector<8xf32> to vector<8x1xf32>
    %cst_27 = arith.constant 3.200000e+01 : f32
    %56 = vector.broadcast %cst_27 : f32 to vector<8x1xf32>
    %57 = arith.divf %55, %56 : vector<8x1xf32>
    %cst_28 = arith.constant 9.99999974E-6 : f32
    %58 = vector.broadcast %cst_28 : f32 to vector<8x1xf32>
    %59 = arith.addf %57, %58 : vector<8x1xf32>
    %60 = math.rsqrt %59 : vector<8x1xf32>
    %61 = vector.broadcast %60 : vector<8x1xf32> to vector<8x32xf32>
    %62 = arith.mulf %52, %61 : vector<8x32xf32>
    %63 = vector.broadcast %21 : vector<1x32xf32> to vector<8x32xf32>
    %64 = arith.mulf %62, %63 : vector<8x32xf32>
    %65 = vector.broadcast %24 : vector<1x32xf32> to vector<8x32xf32>
    %66 = arith.addf %64, %65 : vector<8x32xf32>
    %cst_29 = arith.constant 0.000000e+00 : f32
    %67 = vector.broadcast %cst_29 : f32 to vector<8x32xf32>
    %68 = arith.maximumf %66, %67 : vector<8x32xf32>
    %69 = arith.addf %2, %68 : vector<8x32xf32>
    %c1_i32 = arith.constant 1 : i32
    %70 = arith.index_cast %c1_i32 : i32 to index
    %c0_30 = arith.constant 0 : index
    %c0_31 = arith.constant 0 : index
    %71 = vector.load %arg2[%70, %c0_30, %c0_31] : memref<4x32x32xf32, #tpu.memory_space<vmem>>, vector<1x32x32xf32>
    %72 = vector.shape_cast %71 : vector<1x32x32xf32> to vector<32x32xf32>
    %73 = arith.index_cast %c1_i32 : i32 to index
    %c0_32 = arith.constant 0 : index
    %c0_33 = arith.constant 0 : index
    %74 = vector.load %arg4[%73, %c0_32, %c0_33] : memref<4x32x32xf32, #tpu.memory_space<vmem>>, vector<1x32x32xf32>
    %75 = vector.shape_cast %74 : vector<1x32x32xf32> to vector<32x32xf32>
    %76 = arith.index_cast %c1_i32 : i32 to index
    %c0_34 = arith.constant 0 : index
    %c0_35 = arith.constant 0 : index
    %77 = vector.load %arg6[%76, %c0_34, %c0_35] : memref<4x32x32xf32, #tpu.memory_space<vmem>>, vector<1x32x32xf32>
    %78 = vector.shape_cast %77 : vector<1x32x32xf32> to vector<32x32xf32>
    %79 = arith.index_cast %c1_i32 : i32 to index
    %c0_36 = arith.constant 0 : index
    %c0_37 = arith.constant 0 : index
    %80 = vector.load %arg3[%79, %c0_36, %c0_37] : memref<4x1x32xf32, #tpu.memory_space<vmem>>, vector<1x1x32xf32>
    %81 = vector.shape_cast %80 : vector<1x1x32xf32> to vector<1x32xf32>
    %82 = arith.index_cast %c1_i32 : i32 to index
    %c0_38 = arith.constant 0 : index
    %c0_39 = arith.constant 0 : index
    %83 = vector.load %arg5[%82, %c0_38, %c0_39] : memref<4x1x32xf32, #tpu.memory_space<vmem>>, vector<1x1x32xf32>
    %84 = vector.shape_cast %83 : vector<1x1x32xf32> to vector<1x32xf32>
    %85 = arith.index_cast %c1_i32 : i32 to index
    %c0_40 = arith.constant 0 : index
    %c0_41 = arith.constant 0 : index
    %86 = vector.load %arg7[%85, %c0_40, %c0_41] : memref<4x1x32xf32, #tpu.memory_space<vmem>>, vector<1x1x32xf32>
    %87 = vector.shape_cast %86 : vector<1x1x32xf32> to vector<1x32xf32>
    %88 = arith.index_cast %c1_i32 : i32 to index
    %c0_42 = arith.constant 0 : index
    %c0_43 = arith.constant 0 : index
    %89 = vector.load %arg8[%88, %c0_42, %c0_43] : memref<4x1x32xf32, #tpu.memory_space<vmem>>, vector<1x1x32xf32>
    %90 = vector.shape_cast %89 : vector<1x1x32xf32> to vector<1x32xf32>
    %cst_44 = arith.constant dense<0.000000e+00> : vector<8x32xf32>
    %91 = tpu.matmul %1, %72, %cst_44 {dimension_numbers = #tpu.dot_dimension_numbers<[1], [0], [0], [1], [0, 0, 1, 1], [], []>} : vector<8x32xf32>, vector<32x32xf32>, vector<8x32xf32> -> vector<8x32xf32>
    %92 = vector.broadcast %81 : vector<1x32xf32> to vector<8x32xf32>
    %93 = arith.addf %91, %92 : vector<8x32xf32>
    %cst_45 = arith.constant dense<0.000000e+00> : vector<8x32xf32>
    %94 = tpu.matmul %1, %75, %cst_45 {dimension_numbers = #tpu.dot_dimension_numbers<[1], [0], [0], [1], [0, 0, 1, 1], [], []>} : vector<8x32xf32>, vector<32x32xf32>, vector<8x32xf32> -> vector<8x32xf32>
    %95 = vector.broadcast %84 : vector<1x32xf32> to vector<8x32xf32>
    %96 = arith.addf %94, %95 : vector<8x32xf32>
    %97 = vector.shape_cast %93 : vector<8x32xf32> to vector<1x8x32xf32>
    %98 = vector.shape_cast %96 : vector<8x32xf32> to vector<1x8x32xf32>
    %cst_46 = arith.constant dense<0.000000e+00> : vector<1x8x8xf32>
    %99 = tpu.matmul %97, %98, %cst_46 {dimension_numbers = #tpu.dot_dimension_numbers<[2], [2], [1], [1], [0, 0, 0, 1, 1, 1], [0], [0]>} : vector<1x8x32xf32>, vector<1x8x32xf32>, vector<1x8x8xf32> -> vector<1x8x8xf32>
    %cst_47 = arith.constant dense<0xFF800000> : vector<1x8xf32>
    %100 = vector.multi_reduction <maximumf>, %99, %cst_47 [2] : vector<1x8x8xf32> to vector<1x8xf32>
    %101 = vector.shape_cast %100 : vector<1x8xf32> to vector<1x8x1xf32>
    %102 = vector.broadcast %101 : vector<1x8x1xf32> to vector<1x8x8xf32>
    %103 = arith.subf %99, %102 : vector<1x8x8xf32>
    %104 = math.exp %103 : vector<1x8x8xf32>
    %cst_48 = arith.constant dense<0.000000e+00> : vector<1x8xf32>
    %105 = vector.multi_reduction <add>, %104, %cst_48 [2] : vector<1x8x8xf32> to vector<1x8xf32>
    %106 = vector.shape_cast %105 : vector<1x8xf32> to vector<1x8x1xf32>
    %107 = tpu.reciprocal %106 : vector<1x8x1xf32> -> vector<1x8x1xf32>
    %108 = vector.broadcast %107 : vector<1x8x1xf32> to vector<1x8x8xf32>
    %109 = arith.mulf %104, %108 : vector<1x8x8xf32>
    %cst_49 = arith.constant dense<0.000000e+00> : vector<1x8x32xf32>
    %110 = tpu.matmul %109, %0, %cst_49 {dimension_numbers = #tpu.dot_dimension_numbers<[2], [1], [1], [2], [0, 0, 0, 1, 1, 2], [0], [0]>} : vector<1x8x8xf32>, vector<1x8x32xf32>, vector<1x8x32xf32> -> vector<1x8x32xf32>
    %111 = vector.shape_cast %110 : vector<1x8x32xf32> to vector<8x32xf32>
    %cst_50 = arith.constant dense<0.000000e+00> : vector<8x32xf32>
    %112 = tpu.matmul %111, %78, %cst_50 {dimension_numbers = #tpu.dot_dimension_numbers<[1], [0], [0], [1], [0, 0, 1, 1], [], []>} : vector<8x32xf32>, vector<32x32xf32>, vector<8x32xf32> -> vector<8x32xf32>
    %cst_51 = arith.constant dense<0.000000e+00> : vector<8xf32>
    %113 = vector.multi_reduction <add>, %112, %cst_51 [1] : vector<8x32xf32> to vector<8xf32>
    %114 = vector.shape_cast %113 : vector<8xf32> to vector<8x1xf32>
    %cst_52 = arith.constant 3.200000e+01 : f32
    %115 = vector.broadcast %cst_52 : f32 to vector<8x1xf32>
    %116 = arith.divf %114, %115 : vector<8x1xf32>
    %117 = vector.broadcast %116 : vector<8x1xf32> to vector<8x32xf32>
    %118 = arith.subf %112, %117 : vector<8x32xf32>
    %119 = arith.mulf %118, %118 : vector<8x32xf32>
    %cst_53 = arith.constant dense<0.000000e+00> : vector<8xf32>
    %120 = vector.multi_reduction <add>, %119, %cst_53 [1] : vector<8x32xf32> to vector<8xf32>
    %121 = vector.shape_cast %120 : vector<8xf32> to vector<8x1xf32>
    %cst_54 = arith.constant 3.200000e+01 : f32
    %122 = vector.broadcast %cst_54 : f32 to vector<8x1xf32>
    %123 = arith.divf %121, %122 : vector<8x1xf32>
    %cst_55 = arith.constant 9.99999974E-6 : f32
    %124 = vector.broadcast %cst_55 : f32 to vector<8x1xf32>
    %125 = arith.addf %123, %124 : vector<8x1xf32>
    %126 = math.rsqrt %125 : vector<8x1xf32>
    %127 = vector.broadcast %126 : vector<8x1xf32> to vector<8x32xf32>
    %128 = arith.mulf %118, %127 : vector<8x32xf32>
    %129 = vector.broadcast %87 : vector<1x32xf32> to vector<8x32xf32>
    %130 = arith.mulf %128, %129 : vector<8x32xf32>
    %131 = vector.broadcast %90 : vector<1x32xf32> to vector<8x32xf32>
    %132 = arith.addf %130, %131 : vector<8x32xf32>
    %cst_56 = arith.constant 0.000000e+00 : f32
    %133 = vector.broadcast %cst_56 : f32 to vector<8x32xf32>
    %134 = arith.maximumf %132, %133 : vector<8x32xf32>
    %135 = arith.addf %69, %134 : vector<8x32xf32>
    %c2_i32 = arith.constant 2 : i32
    %136 = arith.index_cast %c2_i32 : i32 to index
    %c0_57 = arith.constant 0 : index
    %c0_58 = arith.constant 0 : index
    %137 = vector.load %arg2[%136, %c0_57, %c0_58] : memref<4x32x32xf32, #tpu.memory_space<vmem>>, vector<1x32x32xf32>
    %138 = vector.shape_cast %137 : vector<1x32x32xf32> to vector<32x32xf32>
    %139 = arith.index_cast %c2_i32 : i32 to index
    %c0_59 = arith.constant 0 : index
    %c0_60 = arith.constant 0 : index
    %140 = vector.load %arg4[%139, %c0_59, %c0_60] : memref<4x32x32xf32, #tpu.memory_space<vmem>>, vector<1x32x32xf32>
    %141 = vector.shape_cast %140 : vector<1x32x32xf32> to vector<32x32xf32>
    %142 = arith.index_cast %c2_i32 : i32 to index
    %c0_61 = arith.constant 0 : index
    %c0_62 = arith.constant 0 : index
    %143 = vector.load %arg6[%142, %c0_61, %c0_62] : memref<4x32x32xf32, #tpu.memory_space<vmem>>, vector<1x32x32xf32>
    %144 = vector.shape_cast %143 : vector<1x32x32xf32> to vector<32x32xf32>
    %145 = arith.index_cast %c2_i32 : i32 to index
    %c0_63 = arith.constant 0 : index
    %c0_64 = arith.constant 0 : index
    %146 = vector.load %arg3[%145, %c0_63, %c0_64] : memref<4x1x32xf32, #tpu.memory_space<vmem>>, vector<1x1x32xf32>
    %147 = vector.shape_cast %146 : vector<1x1x32xf32> to vector<1x32xf32>
    %148 = arith.index_cast %c2_i32 : i32 to index
    %c0_65 = arith.constant 0 : index
    %c0_66 = arith.constant 0 : index
    %149 = vector.load %arg5[%148, %c0_65, %c0_66] : memref<4x1x32xf32, #tpu.memory_space<vmem>>, vector<1x1x32xf32>
    %150 = vector.shape_cast %149 : vector<1x1x32xf32> to vector<1x32xf32>
    %151 = arith.index_cast %c2_i32 : i32 to index
    %c0_67 = arith.constant 0 : index
    %c0_68 = arith.constant 0 : index
    %152 = vector.load %arg7[%151, %c0_67, %c0_68] : memref<4x1x32xf32, #tpu.memory_space<vmem>>, vector<1x1x32xf32>
    %153 = vector.shape_cast %152 : vector<1x1x32xf32> to vector<1x32xf32>
    %154 = arith.index_cast %c2_i32 : i32 to index
    %c0_69 = arith.constant 0 : index
    %c0_70 = arith.constant 0 : index
    %155 = vector.load %arg8[%154, %c0_69, %c0_70] : memref<4x1x32xf32, #tpu.memory_space<vmem>>, vector<1x1x32xf32>
    %156 = vector.shape_cast %155 : vector<1x1x32xf32> to vector<1x32xf32>
    %cst_71 = arith.constant dense<0.000000e+00> : vector<8x32xf32>
    %157 = tpu.matmul %1, %138, %cst_71 {dimension_numbers = #tpu.dot_dimension_numbers<[1], [0], [0], [1], [0, 0, 1, 1], [], []>} : vector<8x32xf32>, vector<32x32xf32>, vector<8x32xf32> -> vector<8x32xf32>
    %158 = vector.broadcast %147 : vector<1x32xf32> to vector<8x32xf32>
    %159 = arith.addf %157, %158 : vector<8x32xf32>
    %cst_72 = arith.constant dense<0.000000e+00> : vector<8x32xf32>
    %160 = tpu.matmul %1, %141, %cst_72 {dimension_numbers = #tpu.dot_dimension_numbers<[1], [0], [0], [1], [0, 0, 1, 1], [], []>} : vector<8x32xf32>, vector<32x32xf32>, vector<8x32xf32> -> vector<8x32xf32>
    %161 = vector.broadcast %150 : vector<1x32xf32> to vector<8x32xf32>
    %162 = arith.addf %160, %161 : vector<8x32xf32>
    %163 = vector.shape_cast %159 : vector<8x32xf32> to vector<1x8x32xf32>
    %164 = vector.shape_cast %162 : vector<8x32xf32> to vector<1x8x32xf32>
    %cst_73 = arith.constant dense<0.000000e+00> : vector<1x8x8xf32>
    %165 = tpu.matmul %163, %164, %cst_73 {dimension_numbers = #tpu.dot_dimension_numbers<[2], [2], [1], [1], [0, 0, 0, 1, 1, 1], [0], [0]>} : vector<1x8x32xf32>, vector<1x8x32xf32>, vector<1x8x8xf32> -> vector<1x8x8xf32>
    %cst_74 = arith.constant dense<0xFF800000> : vector<1x8xf32>
    %166 = vector.multi_reduction <maximumf>, %165, %cst_74 [2] : vector<1x8x8xf32> to vector<1x8xf32>
    %167 = vector.shape_cast %166 : vector<1x8xf32> to vector<1x8x1xf32>
    %168 = vector.broadcast %167 : vector<1x8x1xf32> to vector<1x8x8xf32>
    %169 = arith.subf %165, %168 : vector<1x8x8xf32>
    %170 = math.exp %169 : vector<1x8x8xf32>
    %cst_75 = arith.constant dense<0.000000e+00> : vector<1x8xf32>
    %171 = vector.multi_reduction <add>, %170, %cst_75 [2] : vector<1x8x8xf32> to vector<1x8xf32>
    %172 = vector.shape_cast %171 : vector<1x8xf32> to vector<1x8x1xf32>
    %173 = tpu.reciprocal %172 : vector<1x8x1xf32> -> vector<1x8x1xf32>
    %174 = vector.broadcast %173 : vector<1x8x1xf32> to vector<1x8x8xf32>
    %175 = arith.mulf %170, %174 : vector<1x8x8xf32>
    %cst_76 = arith.constant dense<0.000000e+00> : vector<1x8x32xf32>
    %176 = tpu.matmul %175, %0, %cst_76 {dimension_numbers = #tpu.dot_dimension_numbers<[2], [1], [1], [2], [0, 0, 0, 1, 1, 2], [0], [0]>} : vector<1x8x8xf32>, vector<1x8x32xf32>, vector<1x8x32xf32> -> vector<1x8x32xf32>
    %177 = vector.shape_cast %176 : vector<1x8x32xf32> to vector<8x32xf32>
    %cst_77 = arith.constant dense<0.000000e+00> : vector<8x32xf32>
    %178 = tpu.matmul %177, %144, %cst_77 {dimension_numbers = #tpu.dot_dimension_numbers<[1], [0], [0], [1], [0, 0, 1, 1], [], []>} : vector<8x32xf32>, vector<32x32xf32>, vector<8x32xf32> -> vector<8x32xf32>
    %cst_78 = arith.constant dense<0.000000e+00> : vector<8xf32>
    %179 = vector.multi_reduction <add>, %178, %cst_78 [1] : vector<8x32xf32> to vector<8xf32>
    %180 = vector.shape_cast %179 : vector<8xf32> to vector<8x1xf32>
    %cst_79 = arith.constant 3.200000e+01 : f32
    %181 = vector.broadcast %cst_79 : f32 to vector<8x1xf32>
    %182 = arith.divf %180, %181 : vector<8x1xf32>
    %183 = vector.broadcast %182 : vector<8x1xf32> to vector<8x32xf32>
    %184 = arith.subf %178, %183 : vector<8x32xf32>
    %185 = arith.mulf %184, %184 : vector<8x32xf32>
    %cst_80 = arith.constant dense<0.000000e+00> : vector<8xf32>
    %186 = vector.multi_reduction <add>, %185, %cst_80 [1] : vector<8x32xf32> to vector<8xf32>
    %187 = vector.shape_cast %186 : vector<8xf32> to vector<8x1xf32>
    %cst_81 = arith.constant 3.200000e+01 : f32
    %188 = vector.broadcast %cst_81 : f32 to vector<8x1xf32>
    %189 = arith.divf %187, %188 : vector<8x1xf32>
    %cst_82 = arith.constant 9.99999974E-6 : f32
    %190 = vector.broadcast %cst_82 : f32 to vector<8x1xf32>
    %191 = arith.addf %189, %190 : vector<8x1xf32>
    %192 = math.rsqrt %191 : vector<8x1xf32>
    %193 = vector.broadcast %192 : vector<8x1xf32> to vector<8x32xf32>
    %194 = arith.mulf %184, %193 : vector<8x32xf32>
    %195 = vector.broadcast %153 : vector<1x32xf32> to vector<8x32xf32>
    %196 = arith.mulf %194, %195 : vector<8x32xf32>
    %197 = vector.broadcast %156 : vector<1x32xf32> to vector<8x32xf32>
    %198 = arith.addf %196, %197 : vector<8x32xf32>
    %cst_83 = arith.constant 0.000000e+00 : f32
    %199 = vector.broadcast %cst_83 : f32 to vector<8x32xf32>
    %200 = arith.maximumf %198, %199 : vector<8x32xf32>
    %201 = arith.addf %135, %200 : vector<8x32xf32>
    %c3_i32 = arith.constant 3 : i32
    %202 = arith.index_cast %c3_i32 : i32 to index
    %c0_84 = arith.constant 0 : index
    %c0_85 = arith.constant 0 : index
    %203 = vector.load %arg2[%202, %c0_84, %c0_85] : memref<4x32x32xf32, #tpu.memory_space<vmem>>, vector<1x32x32xf32>
    %204 = vector.shape_cast %203 : vector<1x32x32xf32> to vector<32x32xf32>
    %205 = arith.index_cast %c3_i32 : i32 to index
    %c0_86 = arith.constant 0 : index
    %c0_87 = arith.constant 0 : index
    %206 = vector.load %arg4[%205, %c0_86, %c0_87] : memref<4x32x32xf32, #tpu.memory_space<vmem>>, vector<1x32x32xf32>
    %207 = vector.shape_cast %206 : vector<1x32x32xf32> to vector<32x32xf32>
    %208 = arith.index_cast %c3_i32 : i32 to index
    %c0_88 = arith.constant 0 : index
    %c0_89 = arith.constant 0 : index
    %209 = vector.load %arg6[%208, %c0_88, %c0_89] : memref<4x32x32xf32, #tpu.memory_space<vmem>>, vector<1x32x32xf32>
    %210 = vector.shape_cast %209 : vector<1x32x32xf32> to vector<32x32xf32>
    %211 = arith.index_cast %c3_i32 : i32 to index
    %c0_90 = arith.constant 0 : index
    %c0_91 = arith.constant 0 : index
    %212 = vector.load %arg3[%211, %c0_90, %c0_91] : memref<4x1x32xf32, #tpu.memory_space<vmem>>, vector<1x1x32xf32>
    %213 = vector.shape_cast %212 : vector<1x1x32xf32> to vector<1x32xf32>
    %214 = arith.index_cast %c3_i32 : i32 to index
    %c0_92 = arith.constant 0 : index
    %c0_93 = arith.constant 0 : index
    %215 = vector.load %arg5[%214, %c0_92, %c0_93] : memref<4x1x32xf32, #tpu.memory_space<vmem>>, vector<1x1x32xf32>
    %216 = vector.shape_cast %215 : vector<1x1x32xf32> to vector<1x32xf32>
    %217 = arith.index_cast %c3_i32 : i32 to index
    %c0_94 = arith.constant 0 : index
    %c0_95 = arith.constant 0 : index
    %218 = vector.load %arg7[%217, %c0_94, %c0_95] : memref<4x1x32xf32, #tpu.memory_space<vmem>>, vector<1x1x32xf32>
    %219 = vector.shape_cast %218 : vector<1x1x32xf32> to vector<1x32xf32>
    %220 = arith.index_cast %c3_i32 : i32 to index
    %c0_96 = arith.constant 0 : index
    %c0_97 = arith.constant 0 : index
    %221 = vector.load %arg8[%220, %c0_96, %c0_97] : memref<4x1x32xf32, #tpu.memory_space<vmem>>, vector<1x1x32xf32>
    %222 = vector.shape_cast %221 : vector<1x1x32xf32> to vector<1x32xf32>
    %cst_98 = arith.constant dense<0.000000e+00> : vector<8x32xf32>
    %223 = tpu.matmul %1, %204, %cst_98 {dimension_numbers = #tpu.dot_dimension_numbers<[1], [0], [0], [1], [0, 0, 1, 1], [], []>} : vector<8x32xf32>, vector<32x32xf32>, vector<8x32xf32> -> vector<8x32xf32>
    %224 = vector.broadcast %213 : vector<1x32xf32> to vector<8x32xf32>
    %225 = arith.addf %223, %224 : vector<8x32xf32>
    %cst_99 = arith.constant dense<0.000000e+00> : vector<8x32xf32>
    %226 = tpu.matmul %1, %207, %cst_99 {dimension_numbers = #tpu.dot_dimension_numbers<[1], [0], [0], [1], [0, 0, 1, 1], [], []>} : vector<8x32xf32>, vector<32x32xf32>, vector<8x32xf32> -> vector<8x32xf32>
    %227 = vector.broadcast %216 : vector<1x32xf32> to vector<8x32xf32>
    %228 = arith.addf %226, %227 : vector<8x32xf32>
    %229 = vector.shape_cast %225 : vector<8x32xf32> to vector<1x8x32xf32>
    %230 = vector.shape_cast %228 : vector<8x32xf32> to vector<1x8x32xf32>
    %cst_100 = arith.constant dense<0.000000e+00> : vector<1x8x8xf32>
    %231 = tpu.matmul %229, %230, %cst_100 {dimension_numbers = #tpu.dot_dimension_numbers<[2], [2], [1], [1], [0, 0, 0, 1, 1, 1], [0], [0]>} : vector<1x8x32xf32>, vector<1x8x32xf32>, vector<1x8x8xf32> -> vector<1x8x8xf32>
    %cst_101 = arith.constant dense<0xFF800000> : vector<1x8xf32>
    %232 = vector.multi_reduction <maximumf>, %231, %cst_101 [2] : vector<1x8x8xf32> to vector<1x8xf32>
    %233 = vector.shape_cast %232 : vector<1x8xf32> to vector<1x8x1xf32>
    %234 = vector.broadcast %233 : vector<1x8x1xf32> to vector<1x8x8xf32>
    %235 = arith.subf %231, %234 : vector<1x8x8xf32>
    %236 = math.exp %235 : vector<1x8x8xf32>
    %cst_102 = arith.constant dense<0.000000e+00> : vector<1x8xf32>
    %237 = vector.multi_reduction <add>, %236, %cst_102 [2] : vector<1x8x8xf32> to vector<1x8xf32>
    %238 = vector.shape_cast %237 : vector<1x8xf32> to vector<1x8x1xf32>
    %239 = tpu.reciprocal %238 : vector<1x8x1xf32> -> vector<1x8x1xf32>
    %240 = vector.broadcast %239 : vector<1x8x1xf32> to vector<1x8x8xf32>
    %241 = arith.mulf %236, %240 : vector<1x8x8xf32>
    %cst_103 = arith.constant dense<0.000000e+00> : vector<1x8x32xf32>
    %242 = tpu.matmul %241, %0, %cst_103 {dimension_numbers = #tpu.dot_dimension_numbers<[2], [1], [1], [2], [0, 0, 0, 1, 1, 2], [0], [0]>} : vector<1x8x8xf32>, vector<1x8x32xf32>, vector<1x8x32xf32> -> vector<1x8x32xf32>
    %243 = vector.shape_cast %242 : vector<1x8x32xf32> to vector<8x32xf32>
    %cst_104 = arith.constant dense<0.000000e+00> : vector<8x32xf32>
    %244 = tpu.matmul %243, %210, %cst_104 {dimension_numbers = #tpu.dot_dimension_numbers<[1], [0], [0], [1], [0, 0, 1, 1], [], []>} : vector<8x32xf32>, vector<32x32xf32>, vector<8x32xf32> -> vector<8x32xf32>
    %cst_105 = arith.constant dense<0.000000e+00> : vector<8xf32>
    %245 = vector.multi_reduction <add>, %244, %cst_105 [1] : vector<8x32xf32> to vector<8xf32>
    %246 = vector.shape_cast %245 : vector<8xf32> to vector<8x1xf32>
    %cst_106 = arith.constant 3.200000e+01 : f32
    %247 = vector.broadcast %cst_106 : f32 to vector<8x1xf32>
    %248 = arith.divf %246, %247 : vector<8x1xf32>
    %249 = vector.broadcast %248 : vector<8x1xf32> to vector<8x32xf32>
    %250 = arith.subf %244, %249 : vector<8x32xf32>
    %251 = arith.mulf %250, %250 : vector<8x32xf32>
    %cst_107 = arith.constant dense<0.000000e+00> : vector<8xf32>
    %252 = vector.multi_reduction <add>, %251, %cst_107 [1] : vector<8x32xf32> to vector<8xf32>
    %253 = vector.shape_cast %252 : vector<8xf32> to vector<8x1xf32>
    %cst_108 = arith.constant 3.200000e+01 : f32
    %254 = vector.broadcast %cst_108 : f32 to vector<8x1xf32>
    %255 = arith.divf %253, %254 : vector<8x1xf32>
    %cst_109 = arith.constant 9.99999974E-6 : f32
    %256 = vector.broadcast %cst_109 : f32 to vector<8x1xf32>
    %257 = arith.addf %255, %256 : vector<8x1xf32>
    %258 = math.rsqrt %257 : vector<8x1xf32>
    %259 = vector.broadcast %258 : vector<8x1xf32> to vector<8x32xf32>
    %260 = arith.mulf %250, %259 : vector<8x32xf32>
    %261 = vector.broadcast %219 : vector<1x32xf32> to vector<8x32xf32>
    %262 = arith.mulf %260, %261 : vector<8x32xf32>
    %263 = vector.broadcast %222 : vector<1x32xf32> to vector<8x32xf32>
    %264 = arith.addf %262, %263 : vector<8x32xf32>
    %cst_110 = arith.constant 0.000000e+00 : f32
    %265 = vector.broadcast %cst_110 : f32 to vector<8x32xf32>
    %266 = arith.maximumf %264, %265 : vector<8x32xf32>
    %267 = arith.addf %201, %266 : vector<8x32xf32>
    %c4_i32 = arith.constant 4 : i32
    %268 = vector.shape_cast %267 : vector<8x32xf32> to vector<1x8x32xf32>
    %c0_111 = arith.constant 0 : index
    %c0_112 = arith.constant 0 : index
    %c0_113 = arith.constant 0 : index
    %269 = vector.load %arg9[%c0_111, %c0_112, %c0_113] : memref<1x8x32xf32, #tpu.memory_space<vmem>>, vector<1x8x32xf32>
    tpu.vector_store %arg9[%c0_111, %c0_112, %c0_113], %268 {strides = array<i32>} : memref<1x8x32xf32, #tpu.memory_space<vmem>>, vector<1x8x32xf32>,
    %c0_114 = arith.constant 0 : index
    %c0_115 = arith.constant 0 : index
    %c0_116 = arith.constant 0 : index
    %270 = vector.load %arg10[%c0_114, %c0_115, %c0_116] : memref<1x8x8xf32, #tpu.memory_space<vmem>>, vector<1x8x8xf32>
    tpu.vector_store %arg10[%c0_114, %c0_115, %c0_116], %241 {strides = array<i32>} : memref<1x8x8xf32, #tpu.memory_space<vmem>>, vector<1x8x8xf32>,
    return
  }
  func.func @transform_0(%arg0: i32) -> (i32, i32, i32) {
    %c0_i32 = arith.constant 0 : i32
    %c0_i32_0 = arith.constant 0 : i32
    %c0_i32_1 = arith.constant 0 : i32
    return %arg0, %c0_i32, %c0_i32_0 : i32, i32, i32
  }
  func.func @transform_1(%arg0: i32) -> (i32, i32, i32) {
    %c0_i32 = arith.constant 0 : i32
    %c0_i32_0 = arith.constant 0 : i32
    %c0_i32_1 = arith.constant 0 : i32
    %c0_i32_2 = arith.constant 0 : i32
    return %c0_i32, %c0_i32_0, %c0_i32_1 : i32, i32, i32
  }
  func.func @transform_2(%arg0: i32) -> (i32, i32, i32) {
    %c0_i32 = arith.constant 0 : i32
    %c0_i32_0 = arith.constant 0 : i32
    %c0_i32_1 = arith.constant 0 : i32
    %c0_i32_2 = arith.constant 0 : i32
    return %c0_i32, %c0_i32_0, %c0_i32_1 : i32, i32, i32
  }
  func.func @transform_3(%arg0: i32) -> (i32, i32, i32) {
    %c0_i32 = arith.constant 0 : i32
    %c0_i32_0 = arith.constant 0 : i32
    %c0_i32_1 = arith.constant 0 : i32
    %c0_i32_2 = arith.constant 0 : i32
    return %c0_i32, %c0_i32_0, %c0_i32_1 : i32, i32, i32
  }
  func.func @transform_4(%arg0: i32) -> (i32, i32, i32) {
    %c0_i32 = arith.constant 0 : i32
    %c0_i32_0 = arith.constant 0 : i32
    %c0_i32_1 = arith.constant 0 : i32
    %c0_i32_2 = arith.constant 0 : i32
    return %c0_i32, %c0_i32_0, %c0_i32_1 : i32, i32, i32
  }
  func.func @transform_5(%arg0: i32) -> (i32, i32, i32) {
    %c0_i32 = arith.constant 0 : i32
    %c0_i32_0 = arith.constant 0 : i32
    %c0_i32_1 = arith.constant 0 : i32
    %c0_i32_2 = arith.constant 0 : i32
    return %c0_i32, %c0_i32_0, %c0_i32_1 : i32, i32, i32
  }
  func.func @transform_6(%arg0: i32) -> (i32, i32, i32) {
    %c0_i32 = arith.constant 0 : i32
    %c0_i32_0 = arith.constant 0 : i32
    %c0_i32_1 = arith.constant 0 : i32
    %c0_i32_2 = arith.constant 0 : i32
    return %c0_i32, %c0_i32_0, %c0_i32_1 : i32, i32, i32
  }
  func.func @transform_7(%arg0: i32) -> (i32, i32, i32) {
    %c0_i32 = arith.constant 0 : i32
    %c0_i32_0 = arith.constant 0 : i32
    %c0_i32_1 = arith.constant 0 : i32
    %c0_i32_2 = arith.constant 0 : i32
    return %c0_i32, %c0_i32_0, %c0_i32_1 : i32, i32, i32
  }
  func.func @transform_8(%arg0: i32) -> (i32, i32, i32) {
    %c0_i32 = arith.constant 0 : i32
    %c0_i32_0 = arith.constant 0 : i32
    %c0_i32_1 = arith.constant 0 : i32
    return %arg0, %c0_i32, %c0_i32_0 : i32, i32, i32
  }
  func.func @transform_9(%arg0: i32) -> (i32, i32, i32) {
    %c0_i32 = arith.constant 0 : i32
    %c0_i32_0 = arith.constant 0 : i32
    %c0_i32_1 = arith.constant 0 : i32
    return %arg0, %c0_i32, %c0_i32_0 : i32, i32, i32
  }
}

</mosaic_0001>

<llo_original>
// kernel: tpu_custom_call.1
$region0: #{tpu_custom_call.1}
  #allocation0 [shape = 'u32[]', space=smem, size = 0x4, offset = 0x4, fixed_abs, tag = 'smem constant byte address 0x4 - core index']
  #allocation1 [shape = 'u32[144,128]{1,0:T(1,128)}', space=vmem, size = 0x12000, scoped, tag = 'internal scratch']
  %s0 = inlined_call_operand.hbm [shape: f32[2,8,32], index: 0, kind: input, shape index: {}]
  %s1 = inlined_call_operand.hbm [shape: f32[4,32,32], index: 1, kind: input, shape index: {}]
  %s2 = inlined_call_operand.hbm [shape: f32[4,1,32], index: 2, kind: input, shape index: {}]
  %s3 = inlined_call_operand.hbm [shape: f32[4,32,32], index: 3, kind: input, shape index: {}]
  %s4 = inlined_call_operand.vmem [shape: f32[4,1,32], index: 4, kind: input, shape index: {}]
  %s5 = inlined_call_operand.hbm [shape: f32[4,32,32], index: 5, kind: input, shape index: {}]
  %s6 = inlined_call_operand.vmem [shape: f32[4,1,32], index: 6, kind: input, shape index: {}]
  %s7 = inlined_call_operand.vmem [shape: f32[4,1,32], index: 7, kind: input, shape index: {}]
  %s8 = inlined_call_operand.hbm [shape: f32[2,8,32], index: 8, kind: output, shape index: {0}]
  %s9 = inlined_call_operand.hbm [shape: f32[2,8,8], index: 9, kind: output, shape index: {1}]
  %10 = xla_tuple %s8, %s9
  %s11 = sld [smem:[#allocation0]]
  $region93: #{tpu_custom_call.1} parent=0
    _
  %s13 = ssub.s32 1, %s11
  %s14 = scalar_select 0, %s13, %s11
  $region1: #{tpu_custom_call.1} parent=0
    #allocation2 [shape = 'u8[8192]{0}', space=vmem, size = 0x2000, scoped, tag = 'input window, operand 0']
    #allocation3 [shape = 's32[2]{0}', space=sflag, size = 0x8, scoped, tag = 'scoped memory for tpu_custom_call.1']
    #allocation4 [shape = 's32[2]{0}', space=sflag, size = 0x8, scoped, tag = 'scoped memory for tpu_custom_call.1']
    #allocation5 [shape = 'u8[65536]{0}', space=vmem, size = 0x10000, scoped, tag = 'input window, operand 1, single buffered']
    #allocation6 [shape = 's32[1]{0}', space=sflag, size = 0x4, scoped, tag = 'scoped memory for tpu_custom_call.1']
    #allocation7 [shape = 'u8[2048]{0}', space=vmem, size = 0x800, scoped, tag = 'input window, operand 2, single buffered']
    #allocation8 [shape = 'u8[65536]{0}', space=vmem, size = 0x10000, scoped, tag = 'input window, operand 3, single buffered']
    #allocation9 [shape = 's32[1]{0}', space=sflag, size = 0x4, scoped, tag = 'scoped memory for tpu_custom_call.1']
    #allocation10 [shape = 'u8[65536]{0}', space=vmem, size = 0x10000, scoped, tag = 'input window, operand 5, single buffered']
    #allocation11 [shape = 'u8[8192]{0}', space=vmem, size = 0x2000, scoped, tag = 'output window, operand 0']
    #allocation12 [shape = 'u8[8192]{0}', space=vmem, size = 0x2000, scoped, tag = 'output window, operand 1']
    #allocation13 [shape = 's32[2]{0}', space=sflag, size = 0x8, scoped, tag = 'scoped memory for tpu_custom_call.1']
    %15 = vsyncpa [#allocation3], 0
    %s16 = scalar_lea.sflag [#allocation3], 1
    %17 = vsyncpa %s16, 0
    %18 = vsyncpa [#allocation6], 0
    %19 = vsyncpa [#allocation9], 0
    %20 = vsyncpa [#allocation4], 0
    %s21 = scalar_lea.sflag [#allocation4], 1
    %22 = vsyncpa %s21, 0
    %23 = vsyncpa [#allocation13], 0
    %s24 = scalar_lea.sflag [#allocation13], 1
    %25 = vsyncpa %s24, 0
    loop: start=0, step=1, limit=4
    $region2: #{tpu_custom_call.1} parent=1 // loop_pre_header
      _
    $region3: #{tpu_custom_call.1} parent=1 // loop_header
      %s27 = sphi 0, %s31
      %p28 = scmp.ge.s32.totalorder %s27, 4
      %s37 = sphi 0, %s39
      %s40 = sphi 0, %s37
      %s41 = sphi 0, %s40
      %s57 = sphi 0, %s41
      %s61 = sphi 0, %s61
      %s63 = sphi 0, %s61
      %s64 = sphi 0, %s63
      %s78 = sphi 0, %s64
      %s82 = sphi 0, %s82
      %s84 = sphi 0, %s82
      %s85 = sphi 0, %s84
      %s99 = sphi 0, %s85
      %s103 = sphi 0, %s103
      %s105 = sphi 0, %s103
      %s106 = sphi 0, %s105
      %s120 = sphi 0, %s106
      %s124 = sphi 0, %s124
      %s126 = sphi 0, %s124
      %s127 = sphi 0, %s126
      %s141 = sphi 0, %s127
      %s145 = sphi 0, %s145
      %s147 = sphi 0, %s145
      %s148 = sphi 0, %s147
      %s162 = sphi 0, %s148
      %s166 = sphi 0, %s166
      %s168 = sphi 0, %s166
      %s169 = sphi 0, %s168
      %s183 = sphi 0, %s169
      %s187 = sphi 0, %s187
      %s189 = sphi 0, %s187
      %s190 = sphi 0, %s189
      %s204 = sphi 0, %s190
      %s210 = sphi 0, %s212
      %s213 = sphi 0, %s210
      %s214 = sphi 0, %s213
      %s230 = sphi 0, %s214
      %s236 = sphi 0, %s238
      %s239 = sphi 0, %s236
      %s240 = sphi 0, %s239
      %s256 = sphi 0, %s240
    $region4: #{tpu_custom_call.1} parent=1 // loop_header_branch
      %30 = sbr.rel (%p28) target = $region8
    $region5: #{tpu_custom_call.1} parent=1 // loop_body
      %s32 = ssub.s32 %s27, 1
      %s33 = ssub.s32 %s27, 2
      %s34 = sadd.s32 %s27, 1
      %s35 = ssub.s32 %s27, %s34
      %p36 = scmp.eq.s32.totalorder %s35, 0
      %s38 = sadd.s32 %s37, 1
      %s39 = scalar_select %p36, %s37, %s38
      %p42 = pneg %p36
      %p43 = scmp.eq.s32.totalorder %s27, 1
      %p44 = por %p42, %p43
      %p45 = scmp.ne.s32.totalorder %s37, %s40
      %p46 = scmp.eq.s32.totalorder %s27, 0
      %p47 = por %p45, %p46
      %p48 = scmp.ne.s32.totalorder %s37, %s40
      %p49 = scmp.eq.s32.totalorder %s32, 1
      %p50 = por %p48, %p49
      %p51 = scmp.ne.s32.totalorder %s40, %s41
      %p52 = scmp.eq.s32.totalorder %s32, 0
      %p53 = por %p51, %p52
      %p54 = scmp.ne.s32.totalorder %s40, %s41
      %p55 = scmp.eq.s32.totalorder %s33, 1
      %p56 = por %p54, %p55
      %p58 = scmp.ne.s32.totalorder %s41, %s57
      %p59 = scmp.eq.s32.totalorder %s33, 0
      %p60 = por %p58, %p59
      %s62 = sadd.s32 %s61, 1
      %p65 = scmp.eq.s32.totalorder %s27, 1
      %p66 = scmp.ne.s32.totalorder %s61, %s63
      %p67 = scmp.eq.s32.totalorder %s27, 0
      %p68 = por %p66, %p67
      %p69 = scmp.ne.s32.totalorder %s61, %s63
      %p70 = scmp.eq.s32.totalorder %s32, 1
      %p71 = por %p69, %p70
      %p72 = scmp.ne.s32.totalorder %s63, %s64
      %p73 = scmp.eq.s32.totalorder %s32, 0
      %p74 = por %p72, %p73
      %p75 = scmp.ne.s32.totalorder %s63, %s64
      %p76 = scmp.eq.s32.totalorder %s33, 1
      %p77 = por %p75, %p76
      %p79 = scmp.ne.s32.totalorder %s64, %s78
      %p80 = scmp.eq.s32.totalorder %s33, 0
      %p81 = por %p79, %p80
      %s83 = sadd.s32 %s82, 1
      %p86 = scmp.eq.s32.totalorder %s27, 1
      %p87 = scmp.ne.s32.totalorder %s82, %s84
      %p88 = scmp.eq.s32.totalorder %s27, 0
      %p89 = por %p87, %p88
      %p90 = scmp.ne.s32.totalorder %s82, %s84
      %p91 = scmp.eq.s32.totalorder %s32, 1
      %p92 = por %p90, %p91
      %p93 = scmp.ne.s32.totalorder %s84, %s85
      %p94 = scmp.eq.s32.totalorder %s32, 0
      %p95 = por %p93, %p94
      %p96 = scmp.ne.s32.totalorder %s84, %s85
      %p97 = scmp.eq.s32.totalorder %s33, 1
      %p98 = por %p96, %p97
      %p100 = scmp.ne.s32.totalorder %s85, %s99
      %p101 = scmp.eq.s32.totalorder %s33, 0
      %p102 = por %p100, %p101
      %s104 = sadd.s32 %s103, 1
      %p107 = scmp.eq.s32.totalorder %s27, 1
      %p108 = scmp.ne.s32.totalorder %s103, %s105
      %p109 = scmp.eq.s32.totalorder %s27, 0
      %p110 = por %p108, %p109
      %p111 = scmp.ne.s32.totalorder %s103, %s105
      %p112 = scmp.eq.s32.totalorder %s32, 1
      %p113 = por %p111, %p112
      %p114 = scmp.ne.s32.totalorder %s105, %s106
      %p115 = scmp.eq.s32.totalorder %s32, 0
      %p116 = por %p114, %p115
      %p117 = scmp.ne.s32.totalorder %s105, %s106
      %p118 = scmp.eq.s32.totalorder %s33, 1
      %p119 = por %p117, %p118
      %p121 = scmp.ne.s32.totalorder %s106, %s120
      %p122 = scmp.eq.s32.totalorder %s33, 0
      %p123 = por %p121, %p122
      %s125 = sadd.s32 %s124, 1
      %p128 = scmp.eq.s32.totalorder %s27, 1
      %p129 = scmp.ne.s32.totalorder %s124, %s126
      %p130 = scmp.eq.s32.totalorder %s27, 0
      %p131 = por %p129, %p130
      %p132 = scmp.ne.s32.totalorder %s124, %s126
      %p133 = scmp.eq.s32.totalorder %s32, 1
      %p134 = por %p132, %p133
      %p135 = scmp.ne.s32.totalorder %s126, %s127
      %p136 = scmp.eq.s32.totalorder %s32, 0
      %p137 = por %p135, %p136
      %p138 = scmp.ne.s32.totalorder %s126, %s127
      %p139 = scmp.eq.s32.totalorder %s33, 1
      %p140 = por %p138, %p139
      %p142 = scmp.ne.s32.totalorder %s127, %s141
      %p143 = scmp.eq.s32.totalorder %s33, 0
      %p144 = por %p142, %p143
      %s146 = sadd.s32 %s145, 1
      %p149 = scmp.eq.s32.totalorder %s27, 1
      %p150 = scmp.ne.s32.totalorder %s145, %s147
      %p151 = scmp.eq.s32.totalorder %s27, 0
      %p152 = por %p150, %p151
      %p153 = scmp.ne.s32.totalorder %s145, %s147
      %p154 = scmp.eq.s32.totalorder %s32, 1
      %p155 = por %p153, %p154
      %p156 = scmp.ne.s32.totalorder %s147, %s148
      %p157 = scmp.eq.s32.totalorder %s32, 0
      %p158 = por %p156, %p157
      %p159 = scmp.ne.s32.totalorder %s147, %s148
      %p160 = scmp.eq.s32.totalorder %s33, 1
      %p161 = por %p159, %p160
      %p163 = scmp.ne.s32.totalorder %s148, %s162
      %p164 = scmp.eq.s32.totalorder %s33, 0
      %p165 = por %p163, %p164
      %s167 = sadd.s32 %s166, 1
      %p170 = scmp.eq.s32.totalorder %s27, 1
      %p171 = scmp.ne.s32.totalorder %s166, %s168
      %p172 = scmp.eq.s32.totalorder %s27, 0
      %p173 = por %p171, %p172
      %p174 = scmp.ne.s32.totalorder %s166, %s168
      %p175 = scmp.eq.s32.totalorder %s32, 1
      %p176 = por %p174, %p175
      %p177 = scmp.ne.s32.totalorder %s168, %s169
      %p178 = scmp.eq.s32.totalorder %s32, 0
      %p179 = por %p177, %p178
      %p180 = scmp.ne.s32.totalorder %s168, %s169
      %p181 = scmp.eq.s32.totalorder %s33, 1
      %p182 = por %p180, %p181
      %p184 = scmp.ne.s32.totalorder %s169, %s183
      %p185 = scmp.eq.s32.totalorder %s33, 0
      %p186 = por %p184, %p185
      %s188 = sadd.s32 %s187, 1
      %p191 = scmp.eq.s32.totalorder %s27, 1
      %p192 = scmp.ne.s32.totalorder %s187, %s189
      %p193 = scmp.eq.s32.totalorder %s27, 0
      %p194 = por %p192, %p193
      %p195 = scmp.ne.s32.totalorder %s187, %s189
      %p196 = scmp.eq.s32.totalorder %s32, 1
      %p197 = por %p195, %p196
      %p198 = scmp.ne.s32.totalorder %s189, %s190
      %p199 = scmp.eq.s32.totalorder %s32, 0
      %p200 = por %p198, %p199
      %p201 = scmp.ne.s32.totalorder %s189, %s190
      %p202 = scmp.eq.s32.totalorder %s33, 1
      %p203 = por %p201, %p202
      %p205 = scmp.ne.s32.totalorder %s190, %s204
      %p206 = scmp.eq.s32.totalorder %s33, 0
      %p207 = por %p205, %p206
      %s208 = ssub.s32 %s27, %s34
      %p209 = scmp.eq.s32.totalorder %s208, 0
      %s211 = sadd.s32 %s210, 1
      %s212 = scalar_select %p209, %s210, %s211
      %p215 = pneg %p209
      %p216 = scmp.eq.s32.totalorder %s27, 1
      %p217 = por %p215, %p216
      %p218 = scmp.ne.s32.totalorder %s210, %s213
      %p219 = scmp.eq.s32.totalorder %s27, 0
      %p220 = por %p218, %p219
      %p221 = scmp.ne.s32.totalorder %s210, %s213
      %p222 = scmp.eq.s32.totalorder %s32, 1
      %p223 = por %p221, %p222
      %p224 = scmp.ne.s32.totalorder %s213, %s214
      %p225 = scmp.eq.s32.totalorder %s32, 0
      %p226 = por %p224, %p225
      %p227 = scmp.ne.s32.totalorder %s213, %s214
      %p228 = scmp.eq.s32.totalorder %s33, 1
      %p229 = por %p227, %p228
      %p231 = scmp.ne.s32.totalorder %s214, %s230
      %p232 = scmp.eq.s32.totalorder %s33, 0
      %p233 = por %p231, %p232
      %s234 = ssub.s32 %s27, %s34
      %p235 = scmp.eq.s32.totalorder %s234, 0
      %s237 = sadd.s32 %s236, 1
      %s238 = scalar_select %p235, %s236, %s237
      %p241 = pneg %p235
      %p242 = scmp.eq.s32.totalorder %s27, 1
      %p243 = por %p241, %p242
      %p244 = scmp.ne.s32.totalorder %s236, %s239
      %p245 = scmp.eq.s32.totalorder %s27, 0
      %p246 = por %p244, %p245
      %p247 = scmp.ne.s32.totalorder %s236, %s239
      %p248 = scmp.eq.s32.totalorder %s32, 1
      %p249 = por %p247, %p248
      %p250 = scmp.ne.s32.totalorder %s239, %s240
      %p251 = scmp.eq.s32.totalorder %s32, 0
      %p252 = por %p250, %p251
      %p253 = scmp.ne.s32.totalorder %s239, %s240
      %p254 = scmp.eq.s32.totalorder %s33, 1
      %p255 = por %p253, %p254
      %p257 = scmp.ne.s32.totalorder %s240, %s256
      %p258 = scmp.eq.s32.totalorder %s33, 0
      %p259 = por %p257, %p258
      %p260 = scmp.le.s32.totalorder 1, %s27
      %p261 = scmp.lt.s32.totalorder %s27, 3
      %p262 = pnand %p260, %p261
      %p263 = pneg %p262
      // Predicated region
      $region9: #{tpu_custom_call.1} parent=5 // pred_check
        _
      $region10: #{tpu_custom_call.1} parent=5 // pred_check_branch
        %265 = sbr.rel (%p262) target = $region12
      $region11: #{tpu_custom_call.1} parent=5 // pred_region
        %s266 = ssub.s32 %s27, 1
        // Predicated region
        $region13: #{tpu_custom_call.1} parent=11 // pred_check
          %p267 = pneg %p74
        $region14: #{tpu_custom_call.1} parent=11 // pred_check_branch
          %269 = sbr.rel (%p267) target = $region16
        $region15: #{tpu_custom_call.1} parent=11 // pred_region
          %s271 = ssub.s32 2048, 2048
          %272 = vsyncadd [#allocation6], %s271
          %s273 = sshll.u32 [#allocation5], 4
          %s274 = int_to_ptr.vmem [resolvable:$true] %s273
          %279 = dma.hbm_to_vmem [thread:$0]  %s1, 2048, %s274, [#allocation6], 128, 128, 8
        $region16: #{tpu_custom_call.1} parent=11 // pred_fallthru
          _
        // Predicated region
        $region17: #{tpu_custom_call.1} parent=11 // pred_check
          %p280 = pneg %p95
        $region18: #{tpu_custom_call.1} parent=11 // pred_check_branch
          %282 = sbr.rel (%p280) target = $region20
        $region19: #{tpu_custom_call.1} parent=11 // pred_region
          %s284 = ssub.s32 64, 64
          %285 = vsyncadd [#allocation6], %s284
          %s286 = sshll.u32 [#allocation7], 4
          %s287 = int_to_ptr.vmem [resolvable:$true] %s286
          %292 = dma.hbm_to_vmem [thread:$0]  %s2, 64, %s287, [#allocation6], 16, 16, 1
        $region20: #{tpu_custom_call.1} parent=11 // pred_fallthru
          _
        // Predicated region
        $region21: #{tpu_custom_call.1} parent=11 // pred_check
          %p293 = pneg %p116
        $region22: #{tpu_custom_call.1} parent=11 // pred_check_branch
          %295 = sbr.rel (%p293) target = $region24
        $region23: #{tpu_custom_call.1} parent=11 // pred_region
          %s297 = ssub.s32 2048, 2048
          %298 = vsyncadd [#allocation9], %s297
          %s299 = sshll.u32 [#allocation8], 4
          %s300 = int_to_ptr.vmem [resolvable:$true] %s299
          %305 = dma.hbm_to_vmem [thread:$0]  %s3, 2048, %s300, [#allocation9], 128, 128, 8
        $region24: #{tpu_custom_call.1} parent=11 // pred_fallthru
          _
        // Predicated region
        $region25: #{tpu_custom_call.1} parent=11 // pred_check
          %p306 = pneg %p137
        $region26: #{tpu_custom_call.1} parent=11 // pred_check_branch
          %308 = sbr.rel (%p306) target = $region28
        $region27: #{tpu_custom_call.1} parent=11 // pred_region
          _
        $region28: #{tpu_custom_call.1} parent=11 // pred_fallthru
          _
        // Predicated region
        $region29: #{tpu_custom_call.1} parent=11 // pred_check
          %p309 = pneg %p158
        $region30: #{tpu_custom_call.1} parent=11 // pred_check_branch
          %311 = sbr.rel (%p309) target = $region32
        $region31: #{tpu_custom_call.1} parent=11 // pred_region
          %s313 = ssub.s32 2048, 2048
          %314 = vsyncadd [#allocation9], %s313
          %s315 = sshll.u32 [#allocation10], 4
          %s316 = int_to_ptr.vmem [resolvable:$true] %s315
          %321 = dma.hbm_to_vmem [thread:$0]  %s5, 2048, %s316, [#allocation9], 128, 128, 8
        $region32: #{tpu_custom_call.1} parent=11 // pred_fallthru
          _
        // Predicated region
        $region33: #{tpu_custom_call.1} parent=11 // pred_check
          %p322 = pneg %p179
        $region34: #{tpu_custom_call.1} parent=11 // pred_check_branch
          %324 = sbr.rel (%p322) target = $region36
        $region35: #{tpu_custom_call.1} parent=11 // pred_region
          _
        $region36: #{tpu_custom_call.1} parent=11 // pred_fallthru
          _
        // Predicated region
        $region37: #{tpu_custom_call.1} parent=11 // pred_check
          %p325 = pneg %p200
        $region38: #{tpu_custom_call.1} parent=11 // pred_check_branch
          %327 = sbr.rel (%p325) target = $region40
        $region39: #{tpu_custom_call.1} parent=11 // pred_region
          _
        $region40: #{tpu_custom_call.1} parent=11 // pred_fallthru
          _
      $region12: #{tpu_custom_call.1} parent=5 // pred_fallthru
        _
      %p328 = scmp.lt.s32.totalorder %s27, 2
      // Predicated region
      $region41: #{tpu_custom_call.1} parent=5 // pred_check
        %p329 = pneg %p328
      $region42: #{tpu_custom_call.1} parent=5 // pred_check_branch
        %331 = sbr.rel (%p329) target = $region44
      $region43: #{tpu_custom_call.1} parent=5 // pred_region
        // Predicated region
        $region45: #{tpu_custom_call.1} parent=43 // pred_check
          %p332 = pneg %p47
        $region46: #{tpu_custom_call.1} parent=43 // pred_check_branch
          %334 = sbr.rel (%p332) target = $region48
        $region47: #{tpu_custom_call.1} parent=43 // pred_region
          %s335 = sand.u32 %s37, 1
          %s336 = scalar_lea.sflag [#allocation3], %s335
          %s337 = sand.u32 %s37, 1
          %s338 = smul.addr %s337, 8
          %s339 = scalar_lea.vmem [#allocation2], %s338
          %s341 = ssub.s32 128, 128
          %342 = vsyncadd %s336, %s341
          %s343 = smul.addr %s27, 128
          %s344 = scalar_lea.hbm %s0, %s343
          %s346 = sshll.u32 %s339, 4
          %s347 = int_to_ptr.vmem [resolvable:$true] %s346
          %349 = dma.hbm_to_vmem [thread:$0]  %s344, 128, %s347, %s336
        $region48: #{tpu_custom_call.1} parent=43 // pred_fallthru
          _
      $region44: #{tpu_custom_call.1} parent=5 // pred_fallthru
        _
      %p350 = scmp.le.s32.totalorder 1, %s27
      %p351 = scmp.lt.s32.totalorder %s27, 3
      %p352 = pnand %p350, %p351
      %p353 = pneg %p352
      // Predicated region
      $region49: #{tpu_custom_call.1} parent=5 // pred_check
        _
      $region50: #{tpu_custom_call.1} parent=5 // pred_check_branch
        %355 = sbr.rel (%p352) target = $region52
      $region51: #{tpu_custom_call.1} parent=5 // pred_region
        %s356 = ssub.s32 %s27, 1
        %s357 = sand.u32 %s40, 1
        %s358 = scalar_lea.sflag [#allocation3], %s357
        %s359 = sand.u32 %s40, 1
        %s360 = smul.addr %s359, 8
        %s361 = scalar_lea.vmem [#allocation2], %s360
        // Predicated region
        $region53: #{tpu_custom_call.1} parent=51 // pred_check
          %p362 = pneg %p53
        $region54: #{tpu_custom_call.1} parent=51 // pred_check_branch
          %364 = sbr.rel (%p362) target = $region56
        $region55: #{tpu_custom_call.1} parent=51 // pred_region
          %365 = dma.done %s358, 128
        $region56: #{tpu_custom_call.1} parent=51 // pred_fallthru
          _
        // Predicated region
        $region57: #{tpu_custom_call.1} parent=51 // pred_check
          %p366 = pneg %p74
        $region58: #{tpu_custom_call.1} parent=51 // pred_check_branch
          %368 = sbr.rel (%p366) target = $region60
        $region59: #{tpu_custom_call.1} parent=51 // pred_region
          %369 = dma.done [#allocation6], 2048
        $region60: #{tpu_custom_call.1} parent=51 // pred_fallthru
          _
        // Predicated region
        $region61: #{tpu_custom_call.1} parent=51 // pred_check
          %p370 = pneg %p95
        $region62: #{tpu_custom_call.1} parent=51 // pred_check_branch
          %372 = sbr.rel (%p370) target = $region64
        $region63: #{tpu_custom_call.1} parent=51 // pred_region
          %373 = dma.done [#allocation6], 64
        $region64: #{tpu_custom_call.1} parent=51 // pred_fallthru
          _
        // Predicated region
        $region65: #{tpu_custom_call.1} parent=51 // pred_check
          %p374 = pneg %p116
        $region66: #{tpu_custom_call.1} parent=51 // pred_check_branch
          %376 = sbr.rel (%p374) target = $region68
        $region67: #{tpu_custom_call.1} parent=51 // pred_region
          %377 = dma.done [#allocation9], 2048
        $region68: #{tpu_custom_call.1} parent=51 // pred_fallthru
          _
        // Predicated region
        $region69: #{tpu_custom_call.1} parent=51 // pred_check
          %p378 = pneg %p158
        $region70: #{tpu_custom_call.1} parent=51 // pred_check_branch
          %380 = sbr.rel (%p378) target = $region72
        $region71: #{tpu_custom_call.1} parent=51 // pred_region
          %381 = dma.done [#allocation9], 2048
        $region72: #{tpu_custom_call.1} parent=51 // pred_fallthru
          _
        %s382 = sand.u32 %s40, 1
        %s383 = scalar_lea.sflag [#allocation3], %s382
        %s384 = sand.u32 %s40, 1
        %s385 = smul.addr %s384, 8
        %s386 = scalar_lea.vmem [#allocation2], %s385
        %p387 = pneg %p53
        %p388 = pneg %p50
        %p389 = pneg %p74
        %p390 = pneg %p71
        %p391 = pneg %p95
        %p392 = pneg %p92
        %p393 = pneg %p116
        %p394 = pneg %p113
        %p395 = pneg %p137
        %p396 = pneg %p134
        %p397 = pneg %p158
        %p398 = pneg %p155
        %p399 = pneg %p179
        %p400 = pneg %p176
        %p401 = pneg %p200
        %p402 = pneg %p197
        %p403 = pneg %p226
        %p404 = pneg %p223
        %s405 = sand.u32 %s213, 1
        %s406 = scalar_lea.sflag [#allocation4], %s405
        %s407 = sand.u32 %s213, 1
        %s408 = smul.addr %s407, 8
        %s409 = scalar_lea.vmem [#allocation11], %s408
        %p410 = pneg %p252
        %p411 = pneg %p249
        %s412 = sand.u32 %s239, 1
        %s413 = scalar_lea.sflag [#allocation13], %s412
        %s414 = sand.u32 %s239, 1
        %s415 = smul.addr %s414, 8
        %s416 = scalar_lea.vmem [#allocation12], %s415
        %v417 = vld [vmem:[%s361] sm:$0xff]
        %v418 = vld [vmem:[#allocation5] sm:$0xff]
        %v419 = vld [vmem:[#allocation5 + $0x8] sm:$0xff]
        %v420 = vld [vmem:[#allocation5 + $0x10] sm:$0xff]
        %v421 = vld [vmem:[#allocation5 + $0x18] sm:$0xff]
        %v422 = vld [vmem:[#allocation8] sm:$0xff]
        %v423 = vld [vmem:[#allocation8 + $0x8] sm:$0xff]
        %v424 = vld [vmem:[#allocation8 + $0x10] sm:$0xff]
        %v425 = vld [vmem:[#allocation8 + $0x18] sm:$0xff]
        %v426 = vld [vmem:[#allocation10] sm:$0xff]
        %v427 = vld [vmem:[#allocation10 + $0x8] sm:$0xff]
        %v428 = vld [vmem:[#allocation10 + $0x10] sm:$0xff]
        %v429 = vld [vmem:[#allocation10 + $0x18] sm:$0xff]
        %v430 = vld [vmem:[#allocation7] sm:$0x1]
        %v431 = vld [vmem:[%s4] sm:$0x1]
        %v432 = vld [vmem:[%s6] sm:$0x1]
        %v433 = vld [vmem:[%s7] sm:$0x1]
        %v435 = vlaneseq
        %v436 = vshrl.u32 %v435, 7
        %v437 = vsub.s32 0, %v436
        %v438 = vrot.slane %v430, %v437
        %vm440 = vcmask 261120
        %v442 = vsel %vm440, %v417, 0
        %444 = vmatprep.subr.mxu0 0.0
        %445 = vmatpush1.msra.mxu0 0.0
        %446 = vmatprep.subr.mxu0 0.0
        %447 = vmatpush1.msra.mxu0 0.0
        %448 = vmatprep.subr.mxu0 0.0
        %449 = vmatpush1.msra.mxu0 0.0
        %450 = vmatprep.subr.mxu0 0.0
        %451 = vmatpush1.msra.mxu0 0.0
        %452 = vmatprep.subr.mxu0 0.0
        %453 = vmatpush1.msra.mxu0 0.0
        %454 = vmatprep.subr.mxu0 0.0
        %455 = vmatpush1.msra.mxu0 0.0
        %456 = vmatprep.subr.mxu0 0.0
        %457 = vmatpush1.msra.mxu0 0.0
        %458 = vmatprep.subr.mxu0 0.0
        %459 = vmatpush1.msra.mxu0 0.0
        %460 = vmatprep.subr.mxu0 0.0
        %461 = vmatpush1.msra.mxu0 0.0
        %462 = vmatprep.subr.mxu0 0.0
        %463 = vmatpush1.msra.mxu0 0.0
        %464 = vmatprep.subr.mxu0 0.0
        %465 = vmatpush1.msra.mxu0 0.0
        %466 = vmatprep.subr.mxu0 0.0
        %467 = vmatpush1.msra.mxu0 0.0
        %468 = vmatprep.subr.mxu0 0.0
        %469 = vmatpush1.msra.mxu0 %v421
        %470 = vmatprep.subr.mxu0 0.0
        %471 = vmatpush1.msra.mxu0 %v420
        %472 = vmatprep.subr.mxu0 0.0
        %473 = vmatpush1.msra.mxu0 %v419
        %474 = vmatprep.subr.mxu0 0.0
        %475 = vmatpush1.msra.mxu0 %v418
        %476 = vmatprep.subr.mxu0 0.0
        %477 = vmatpush2.msra.mxu0 0.0
        %478 = vmatprep.subr.mxu0 0.0
        %479 = vmatpush2.msra.mxu0 0.0
        %480 = vmatprep.subr.mxu0 0.0
        %481 = vmatpush2.msra.mxu0 0.0
        %482 = vmatprep.subr.mxu0 0.0
        %483 = vmatpush2.msra.mxu0 0.0
        %484 = vmatprep.subr.mxu0 0.0
        %485 = vmatpush2.msra.mxu0 0.0
        %486 = vmatprep.subr.mxu0 0.0
        %487 = vmatpush2.msra.mxu0 0.0
        %488 = vmatprep.subr.mxu0 0.0
        %489 = vmatpush2.msra.mxu0 0.0
        %490 = vmatprep.subr.mxu0 0.0
        %491 = vmatpush2.msra.mxu0 0.0
        %492 = vmatprep.subr.mxu0 0.0
        %493 = vmatpush2.msra.mxu0 0.0
        %494 = vmatprep.subr.mxu0 0.0
        %495 = vmatpush2.msra.mxu0 0.0
        %496 = vmatprep.subr.mxu0 0.0
        %497 = vmatpush2.msra.mxu0 0.0
        %498 = vmatprep.subr.mxu0 0.0
        %499 = vmatpush2.msra.mxu0 0.0
        %500 = vmatprep.subr.mxu0 0.0
        %501 = vmatpush2.msra.mxu0 0.0
        %502 = vmatprep.subr.mxu0 0.0
        %503 = vmatpush2.msra.mxu0 0.0
        %504 = vmatprep.subr.mxu0 0.0
        %505 = vmatpush2.msra.mxu0 0.0
        %506 = vmatprep.subr.mxu0 0.0
        %507 = vmatpush2.msra.mxu0 0.0
        %508 = vmatprep.mubr.f32.mxu0 0.0
        %509 = vmatmul.mubr.f32.gmra.mxu0 %v442
        %v510 = vpop.f32.mrf.mxu0
        %v511 = vadd.f32 %v438, %v510
        %v512 = vpop.f32.mrf.mxu0
        %513 = vdwg.mxu0
        %v515 = vlaneseq
        %v516 = vshrl.u32 %v515, 7
        %v517 = vsub.s32 0, %v516
        %v518 = vrot.slane %v431, %v517
        %520 = vmatprep.subr.mxu0 0.0
        %521 = vmatpush1.msra.mxu0 0.0
        %522 = vmatprep.subr.mxu0 0.0
        %523 = vmatpush1.msra.mxu0 0.0
        %524 = vmatprep.subr.mxu0 0.0
        %525 = vmatpush1.msra.mxu0 0.0
        %526 = vmatprep.subr.mxu0 0.0
        %527 = vmatpush1.msra.mxu0 0.0
        %528 = vmatprep.subr.mxu0 0.0
        %529 = vmatpush1.msra.mxu0 0.0
        %530 = vmatprep.subr.mxu0 0.0
        %531 = vmatpush1.msra.mxu0 0.0
        %532 = vmatprep.subr.mxu0 0.0
        %533 = vmatpush1.msra.mxu0 0.0
        %534 = vmatprep.subr.mxu0 0.0
        %535 = vmatpush1.msra.mxu0 0.0
        %536 = vmatprep.subr.mxu0 0.0
        %537 = vmatpush1.msra.mxu0 0.0
        %538 = vmatprep.subr.mxu0 0.0
        %539 = vmatpush1.msra.mxu0 0.0
        %540 = vmatprep.subr.mxu0 0.0
        %541 = vmatpush1.msra.mxu0 0.0
        %542 = vmatprep.subr.mxu0 0.0
        %543 = vmatpush1.msra.mxu0 0.0
        %544 = vmatprep.subr.mxu0 0.0
        %545 = vmatpush1.msra.mxu0 %v425
        %546 = vmatprep.subr.mxu0 0.0
        %547 = vmatpush1.msra.mxu0 %v424
        %548 = vmatprep.subr.mxu0 0.0
        %549 = vmatpush1.msra.mxu0 %v423
        %550 = vmatprep.subr.mxu0 0.0
        %551 = vmatpush1.msra.mxu0 %v422
        %552 = vmatprep.subr.mxu0 0.0
        %553 = vmatpush2.msra.mxu0 0.0
        %554 = vmatprep.subr.mxu0 0.0
        %555 = vmatpush2.msra.mxu0 0.0
        %556 = vmatprep.subr.mxu0 0.0
        %557 = vmatpush2.msra.mxu0 0.0
        %558 = vmatprep.subr.mxu0 0.0
        %559 = vmatpush2.msra.mxu0 0.0
        %560 = vmatprep.subr.mxu0 0.0
        %561 = vmatpush2.msra.mxu0 0.0
        %562 = vmatprep.subr.mxu0 0.0
        %563 = vmatpush2.msra.mxu0 0.0
        %564 = vmatprep.subr.mxu0 0.0
        %565 = vmatpush2.msra.mxu0 0.0
        %566 = vmatprep.subr.mxu0 0.0
        %567 = vmatpush2.msra.mxu0 0.0
        %568 = vmatprep.subr.mxu0 0.0
        %569 = vmatpush2.msra.mxu0 0.0
        %570 = vmatprep.subr.mxu0 0.0
        %571 = vmatpush2.msra.mxu0 0.0
        %572 = vmatprep.subr.mxu0 0.0
        %573 = vmatpush2.msra.mxu0 0.0
        %574 = vmatprep.subr.mxu0 0.0
        %575 = vmatpush2.msra.mxu0 0.0
        %576 = vmatprep.subr.mxu0 0.0
        %577 = vmatpush2.msra.mxu0 0.0
        %578 = vmatprep.subr.mxu0 0.0
        %579 = vmatpush2.msra.mxu0 0.0
        %580 = vmatprep.subr.mxu0 0.0
        %581 = vmatpush2.msra.mxu0 0.0
        %582 = vmatprep.subr.mxu0 0.0
        %583 = vmatpush2.msra.mxu0 0.0
        %584 = vmatprep.mubr.f32.mxu0 0.0
        %585 = vmatmul.mubr.f32.gmra.mxu0 %v442
        %v586 = vpop.f32.mrf.mxu0
        %v587 = vadd.f32 %v518, %v586
        %v588 = vpop.f32.mrf.mxu0
        %589 = vdwg.mxu0
        %v591 = vsel %vm440, %v511, 0
        %v594 = vsel %vm440, %v587, 0
        %596 = vmatprep.subr.mxu0 0.0
        %597 = vmatpush1.xpose.msra.mxu0 0.0
        %598 = vmatprep.subr.mxu0 0.0
        %599 = vmatpush1.xpose.msra.mxu0 0.0
        %600 = vmatprep.subr.mxu0 0.0
        %601 = vmatpush1.xpose.msra.mxu0 0.0
        %602 = vmatprep.subr.mxu0 0.0
        %603 = vmatpush1.xpose.msra.mxu0 0.0
        %604 = vmatprep.subr.mxu0 0.0
        %605 = vmatpush1.xpose.msra.mxu0 0.0
        %606 = vmatprep.subr.mxu0 0.0
        %607 = vmatpush1.xpose.msra.mxu0 0.0
        %608 = vmatprep.subr.mxu0 0.0
        %609 = vmatpush1.xpose.msra.mxu0 0.0
        %610 = vmatprep.subr.mxu0 0.0
        %611 = vmatpush1.xpose.msra.mxu0 0.0
        %612 = vmatprep.subr.mxu0 0.0
        %613 = vmatpush1.xpose.msra.mxu0 0.0
        %614 = vmatprep.subr.mxu0 0.0
        %615 = vmatpush1.xpose.msra.mxu0 0.0
        %616 = vmatprep.subr.mxu0 0.0
        %617 = vmatpush1.xpose.msra.mxu0 0.0
        %618 = vmatprep.subr.mxu0 0.0
        %619 = vmatpush1.xpose.msra.mxu0 0.0
        %620 = vmatprep.subr.mxu0 0.0
        %621 = vmatpush1.xpose.msra.mxu0 0.0
        %622 = vmatprep.subr.mxu0 0.0
        %623 = vmatpush1.xpose.msra.mxu0 0.0
        %624 = vmatprep.subr.mxu0 0.0
        %625 = vmatpush1.xpose.msra.mxu0 0.0
        %626 = vmatprep.subr.mxu0 0.0
        %627 = vmatpush1.xpose.msra.mxu0 %v594
        %628 = vmatprep.subr.mxu0 0.0
        %629 = vmatpush2.xpose.msra.mxu0 0.0
        %630 = vmatprep.subr.mxu0 0.0
        %631 = vmatpush2.xpose.msra.mxu0 0.0
        %632 = vmatprep.subr.mxu0 0.0
        %633 = vmatpush2.xpose.msra.mxu0 0.0
        %634 = vmatprep.subr.mxu0 0.0
        %635 = vmatpush2.xpose.msra.mxu0 0.0
        %636 = vmatprep.subr.mxu0 0.0
        %637 = vmatpush2.xpose.msra.mxu0 0.0
        %638 = vmatprep.subr.mxu0 0.0
        %639 = vmatpush2.xpose.msra.mxu0 0.0
        %640 = vmatprep.subr.mxu0 0.0
        %641 = vmatpush2.xpose.msra.mxu0 0.0
        %642 = vmatprep.subr.mxu0 0.0
        %643 = vmatpush2.xpose.msra.mxu0 0.0
        %644 = vmatprep.subr.mxu0 0.0
        %645 = vmatpush2.xpose.msra.mxu0 0.0
        %646 = vmatprep.subr.mxu0 0.0
        %647 = vmatpush2.xpose.msra.mxu0 0.0
        %648 = vmatprep.subr.mxu0 0.0
        %649 = vmatpush2.xpose.msra.mxu0 0.0
        %650 = vmatprep.subr.mxu0 0.0
        %651 = vmatpush2.xpose.msra.mxu0 0.0
        %652 = vmatprep.subr.mxu0 0.0
        %653 = vmatpush2.xpose.msra.mxu0 0.0
        %654 = vmatprep.subr.mxu0 0.0
        %655 = vmatpush2.xpose.msra.mxu0 0.0
        %656 = vmatprep.subr.mxu0 0.0
        %657 = vmatpush2.xpose.msra.mxu0 0.0
        %658 = vmatprep.subr.mxu0 0.0
        %659 = vmatpush2.xpose.msra.mxu0 0.0
        %660 = vmatprep.mubr.f32.mxu0 0.0
        %661 = vmatmul.mubr.f32.gmra.mxu0 %v591
        %v662 = vpop.f32.mrf.mxu0
        %v663 = vadd.f32 0.0, %v662
        %v664 = vpop.f32.mrf.mxu0
        %665 = vdwg.mxu0
        %vm666 = vcmask 64512
        %v667 = vsel %vm666, %v663, -inf
        %668 = vmax.xlane.f32.xlu0 %v667
        %v669 = vpop.xlane.xlu0 %668
        %v670 = vsub.f32 %v663, %v669
        %v671 = vmul.f32 %v670, 1.442695
        %v672 = vpow.pop %v671
        %v673 = vsel %vm666, %v672, 0.0
        %674 = vadd.xlane.f32.xlu0 %v673
        %v675 = vpop.xlane.xlu0 %674
        %v676 = vrcp.pop %v675
        %v677 = vmul.f32 %v672, %v676
        %v679 = vsel %vm666, %v677, 0
        %681 = vmatprep.subr.mxu0 0.0
        %682 = vmatpush1.msra.mxu0 0.0
        %683 = vmatprep.subr.mxu0 0.0
        %684 = vmatpush1.msra.mxu0 0.0
        %685 = vmatprep.subr.mxu0 0.0
        %686 = vmatpush1.msra.mxu0 0.0
        %687 = vmatprep.subr.mxu0 0.0
        %688 = vmatpush1.msra.mxu0 0.0
        %689 = vmatprep.subr.mxu0 0.0
        %690 = vmatpush1.msra.mxu0 0.0
        %691 = vmatprep.subr.mxu0 0.0
        %692 = vmatpush1.msra.mxu0 0.0
        %693 = vmatprep.subr.mxu0 0.0
        %694 = vmatpush1.msra.mxu0 0.0
        %695 = vmatprep.subr.mxu0 0.0
        %696 = vmatpush1.msra.mxu0 0.0
        %697 = vmatprep.subr.mxu0 0.0
        %698 = vmatpush1.msra.mxu0 0.0
        %699 = vmatprep.subr.mxu0 0.0
        %700 = vmatpush1.msra.mxu0 0.0
        %701 = vmatprep.subr.mxu0 0.0
        %702 = vmatpush1.msra.mxu0 0.0
        %703 = vmatprep.subr.mxu0 0.0
        %704 = vmatpush1.msra.mxu0 0.0
        %705 = vmatprep.subr.mxu0 0.0
        %706 = vmatpush1.msra.mxu0 0.0
        %707 = vmatprep.subr.mxu0 0.0
        %708 = vmatpush1.msra.mxu0 0.0
        %709 = vmatprep.subr.mxu0 0.0
        %710 = vmatpush1.msra.mxu0 0.0
        %711 = vmatprep.subr.mxu0 0.0
        %712 = vmatpush1.msra.mxu0 %v417
        %713 = vmatprep.subr.mxu0 0.0
        %714 = vmatpush2.msra.mxu0 0.0
        %715 = vmatprep.subr.mxu0 0.0
        %716 = vmatpush2.msra.mxu0 0.0
        %717 = vmatprep.subr.mxu0 0.0
        %718 = vmatpush2.msra.mxu0 0.0
        %719 = vmatprep.subr.mxu0 0.0
        %720 = vmatpush2.msra.mxu0 0.0
        %721 = vmatprep.subr.mxu0 0.0
        %722 = vmatpush2.msra.mxu0 0.0
        %723 = vmatprep.subr.mxu0 0.0
        %724 = vmatpush2.msra.mxu0 0.0
        %725 = vmatprep.subr.mxu0 0.0
        %726 = vmatpush2.msra.mxu0 0.0
        %727 = vmatprep.subr.mxu0 0.0
        %728 = vmatpush2.msra.mxu0 0.0
        %729 = vmatprep.subr.mxu0 0.0
        %730 = vmatpush2.msra.mxu0 0.0
        %731 = vmatprep.subr.mxu0 0.0
        %732 = vmatpush2.msra.mxu0 0.0
        %733 = vmatprep.subr.mxu0 0.0
        %734 = vmatpush2.msra.mxu0 0.0
        %735 = vmatprep.subr.mxu0 0.0
        %736 = vmatpush2.msra.mxu0 0.0
        %737 = vmatprep.subr.mxu0 0.0
        %738 = vmatpush2.msra.mxu0 0.0
        %739 = vmatprep.subr.mxu0 0.0
        %740 = vmatpush2.msra.mxu0 0.0
        %741 = vmatprep.subr.mxu0 0.0
        %742 = vmatpush2.msra.mxu0 0.0
        %743 = vmatprep.subr.mxu0 0.0
        %744 = vmatpush2.msra.mxu0 0.0
        %745 = vmatprep.mubr.f32.mxu0 0.0
        %746 = vmatmul.mubr.f32.gmra.mxu0 %v679
        %v747 = vpop.f32.mrf.mxu0
        %v748 = vadd.f32 0.0, %v747
        %v749 = vpop.f32.mrf.mxu0
        %750 = vdwg.mxu0
        %v752 = vsel %vm440, %v748, 0
        %754 = vmatprep.subr.mxu0 0.0
        %755 = vmatpush1.msra.mxu0 0.0
        %756 = vmatprep.subr.mxu0 0.0
        %757 = vmatpush1.msra.mxu0 0.0
        %758 = vmatprep.subr.mxu0 0.0
        %759 = vmatpush1.msra.mxu0 0.0
        %760 = vmatprep.subr.mxu0 0.0
        %761 = vmatpush1.msra.mxu0 0.0
        %762 = vmatprep.subr.mxu0 0.0
        %763 = vmatpush1.msra.mxu0 0.0
        %764 = vmatprep.subr.mxu0 0.0
        %765 = vmatpush1.msra.mxu0 0.0
        %766 = vmatprep.subr.mxu0 0.0
        %767 = vmatpush1.msra.mxu0 0.0
        %768 = vmatprep.subr.mxu0 0.0
        %769 = vmatpush1.msra.mxu0 0.0
        %770 = vmatprep.subr.mxu0 0.0
        %771 = vmatpush1.msra.mxu0 0.0
        %772 = vmatprep.subr.mxu0 0.0
        %773 = vmatpush1.msra.mxu0 0.0
        %774 = vmatprep.subr.mxu0 0.0
        %775 = vmatpush1.msra.mxu0 0.0
        %776 = vmatprep.subr.mxu0 0.0
        %777 = vmatpush1.msra.mxu0 0.0
        %778 = vmatprep.subr.mxu0 0.0
        %779 = vmatpush1.msra.mxu0 %v429
        %780 = vmatprep.subr.mxu0 0.0
        %781 = vmatpush1.msra.mxu0 %v428
        %782 = vmatprep.subr.mxu0 0.0
        %783 = vmatpush1.msra.mxu0 %v427
        %784 = vmatprep.subr.mxu0 0.0
        %785 = vmatpush1.msra.mxu0 %v426
        %786 = vmatprep.subr.mxu0 0.0
        %787 = vmatpush2.msra.mxu0 0.0
        %788 = vmatprep.subr.mxu0 0.0
        %789 = vmatpush2.msra.mxu0 0.0
        %790 = vmatprep.subr.mxu0 0.0
        %791 = vmatpush2.msra.mxu0 0.0
        %792 = vmatprep.subr.mxu0 0.0
        %793 = vmatpush2.msra.mxu0 0.0
        %794 = vmatprep.subr.mxu0 0.0
        %795 = vmatpush2.msra.mxu0 0.0
        %796 = vmatprep.subr.mxu0 0.0
        %797 = vmatpush2.msra.mxu0 0.0
        %798 = vmatprep.subr.mxu0 0.0
        %799 = vmatpush2.msra.mxu0 0.0
        %800 = vmatprep.subr.mxu0 0.0
        %801 = vmatpush2.msra.mxu0 0.0
        %802 = vmatprep.subr.mxu0 0.0
        %803 = vmatpush2.msra.mxu0 0.0
        %804 = vmatprep.subr.mxu0 0.0
        %805 = vmatpush2.msra.mxu0 0.0
        %806 = vmatprep.subr.mxu0 0.0
        %807 = vmatpush2.msra.mxu0 0.0
        %808 = vmatprep.subr.mxu0 0.0
        %809 = vmatpush2.msra.mxu0 0.0
        %810 = vmatprep.subr.mxu0 0.0
        %811 = vmatpush2.msra.mxu0 0.0
        %812 = vmatprep.subr.mxu0 0.0
        %813 = vmatpush2.msra.mxu0 0.0
        %814 = vmatprep.subr.mxu0 0.0
        %815 = vmatpush2.msra.mxu0 0.0
        %816 = vmatprep.subr.mxu0 0.0
        %817 = vmatpush2.msra.mxu0 0.0
        %818 = vmatprep.mubr.f32.mxu0 0.0
        %819 = vmatmul.mubr.f32.gmra.mxu0 %v752
        %v820 = vpop.f32.mrf.mxu0
        %v821 = vadd.f32 0.0, %v820
        %v822 = vpop.f32.mrf.mxu0
        %823 = vdwg.mxu0
        %v824 = vsel %vm440, %v821, 0.0
        %825 = vadd.xlane.f32.xlu0 %v824
        %v826 = vpop.xlane.xlu0 %825
        %v827 = vrcp.pop 32.0
        %v828 = vmul.f32 %v826, %v827
        %v829 = vsub.f32 %v821, %v828
        %v830 = vmul.f32 %v829, %v829
        %v831 = vsel %vm440, %v830, 0.0
        %832 = vadd.xlane.f32.xlu0 %v831
        %v833 = vpop.xlane.xlu0 %832
        %v834 = vmul.f32 %v833, %v827
        %v835 = vadd.f32 %v834, 1e-05
        %v836 = vrsqrt.pop %v835
        %v837 = vmul.f32 %v829, %v836
        %v839 = vlaneseq
        %v840 = vshrl.u32 %v839, 7
        %v841 = vsub.s32 0, %v840
        %v842 = vrot.slane %v432, %v841
        %v844 = vmul.f32 %v837, %v842
        %v846 = vlaneseq
        %v847 = vshrl.u32 %v846, 7
        %v848 = vsub.s32 0, %v847
        %v849 = vrot.slane %v433, %v848
        %v851 = vadd.f32 %v844, %v849
        %v852 = vmax.f32 %v851, 0.0
        %v853 = vadd.f32 %v852, 0.0
        %s854 = scalar_lea.vmem [#allocation5], 32
        %v855 = vld [vmem:[%s854] sm:$0xff]
        %v856 = vld [vmem:[%s854 + $0x8] sm:$0xff]
        %v857 = vld [vmem:[%s854 + $0x10] sm:$0xff]
        %v858 = vld [vmem:[%s854 + $0x18] sm:$0xff]
        %s859 = scalar_lea.vmem [#allocation8], 32
        %v860 = vld [vmem:[%s859] sm:$0xff]
        %v861 = vld [vmem:[%s859 + $0x8] sm:$0xff]
        %v862 = vld [vmem:[%s859 + $0x10] sm:$0xff]
        %v863 = vld [vmem:[%s859 + $0x18] sm:$0xff]
        %s864 = scalar_lea.vmem [#allocation10], 32
        %v865 = vld [vmem:[%s864] sm:$0xff]
        %v866 = vld [vmem:[%s864 + $0x8] sm:$0xff]
        %v867 = vld [vmem:[%s864 + $0x10] sm:$0xff]
        %v868 = vld [vmem:[%s864 + $0x18] sm:$0xff]
        %s869 = scalar_lea.vmem [#allocation7], 1
        %v870 = vld [vmem:[%s869] sm:$0x1]
        %s871 = scalar_lea.vmem %s4, 1
        %v872 = vld [vmem:[%s871] sm:$0x1]
        %s873 = scalar_lea.vmem %s6, 1
        %v874 = vld [vmem:[%s873] sm:$0x1]
        %s875 = scalar_lea.vmem %s7, 1
        %v876 = vld [vmem:[%s875] sm:$0x1]
        %v878 = vlaneseq
        %v879 = vshrl.u32 %v878, 7
        %v880 = vsub.s32 0, %v879
        %v881 = vrot.slane %v870, %v880
        %883 = vmatprep.subr.mxu0 0.0
        %884 = vmatpush1.msra.mxu0 0.0
        %885 = vmatprep.subr.mxu0 0.0
        %886 = vmatpush1.msra.mxu0 0.0
        %887 = vmatprep.subr.mxu0 0.0
        %888 = vmatpush1.msra.mxu0 0.0
        %889 = vmatprep.subr.mxu0 0.0
        %890 = vmatpush1.msra.mxu0 0.0
        %891 = vmatprep.subr.mxu0 0.0
        %892 = vmatpush1.msra.mxu0 0.0
        %893 = vmatprep.subr.mxu0 0.0
        %894 = vmatpush1.msra.mxu0 0.0
        %895 = vmatprep.subr.mxu0 0.0
        %896 = vmatpush1.msra.mxu0 0.0
        %897 = vmatprep.subr.mxu0 0.0
        %898 = vmatpush1.msra.mxu0 0.0
        %899 = vmatprep.subr.mxu0 0.0
        %900 = vmatpush1.msra.mxu0 0.0
        %901 = vmatprep.subr.mxu0 0.0
        %902 = vmatpush1.msra.mxu0 0.0
        %903 = vmatprep.subr.mxu0 0.0
        %904 = vmatpush1.msra.mxu0 0.0
        %905 = vmatprep.subr.mxu0 0.0
        %906 = vmatpush1.msra.mxu0 0.0
        %907 = vmatprep.subr.mxu0 0.0
        %908 = vmatpush1.msra.mxu0 %v858
        %909 = vmatprep.subr.mxu0 0.0
        %910 = vmatpush1.msra.mxu0 %v857
        %911 = vmatprep.subr.mxu0 0.0
        %912 = vmatpush1.msra.mxu0 %v856
        %913 = vmatprep.subr.mxu0 0.0
        %914 = vmatpush1.msra.mxu0 %v855
        %915 = vmatprep.subr.mxu0 0.0
        %916 = vmatpush2.msra.mxu0 0.0
        %917 = vmatprep.subr.mxu0 0.0
        %918 = vmatpush2.msra.mxu0 0.0
        %919 = vmatprep.subr.mxu0 0.0
        %920 = vmatpush2.msra.mxu0 0.0
        %921 = vmatprep.subr.mxu0 0.0
        %922 = vmatpush2.msra.mxu0 0.0
        %923 = vmatprep.subr.mxu0 0.0
        %924 = vmatpush2.msra.mxu0 0.0
        %925 = vmatprep.subr.mxu0 0.0
        %926 = vmatpush2.msra.mxu0 0.0
        %927 = vmatprep.subr.mxu0 0.0
        %928 = vmatpush2.msra.mxu0 0.0
        %929 = vmatprep.subr.mxu0 0.0
        %930 = vmatpush2.msra.mxu0 0.0
        %931 = vmatprep.subr.mxu0 0.0
        %932 = vmatpush2.msra.mxu0 0.0
        %933 = vmatprep.subr.mxu0 0.0
        %934 = vmatpush2.msra.mxu0 0.0
        %935 = vmatprep.subr.mxu0 0.0
        %936 = vmatpush2.msra.mxu0 0.0
        %937 = vmatprep.subr.mxu0 0.0
        %938 = vmatpush2.msra.mxu0 0.0
        %939 = vmatprep.subr.mxu0 0.0
        %940 = vmatpush2.msra.mxu0 0.0
        %941 = vmatprep.subr.mxu0 0.0
        %942 = vmatpush2.msra.mxu0 0.0
        %943 = vmatprep.subr.mxu0 0.0
        %944 = vmatpush2.msra.mxu0 0.0
        %945 = vmatprep.subr.mxu0 0.0
        %946 = vmatpush2.msra.mxu0 0.0
        %947 = vmatprep.mubr.f32.mxu0 0.0
        %948 = vmatmul.mubr.f32.gmra.mxu0 %v442
        %v949 = vpop.f32.mrf.mxu0
        %v950 = vadd.f32 %v881, %v949
        %v951 = vpop.f32.mrf.mxu0
        %952 = vdwg.mxu0
        %v954 = vlaneseq
        %v955 = vshrl.u32 %v954, 7
        %v956 = vsub.s32 0, %v955
        %v957 = vrot.slane %v872, %v956
        %959 = vmatprep.subr.mxu0 0.0
        %960 = vmatpush1.msra.mxu0 0.0
        %961 = vmatprep.subr.mxu0 0.0
        %962 = vmatpush1.msra.mxu0 0.0
        %963 = vmatprep.subr.mxu0 0.0
        %964 = vmatpush1.msra.mxu0 0.0
        %965 = vmatprep.subr.mxu0 0.0
        %966 = vmatpush1.msra.mxu0 0.0
        %967 = vmatprep.subr.mxu0 0.0
        %968 = vmatpush1.msra.mxu0 0.0
        %969 = vmatprep.subr.mxu0 0.0
        %970 = vmatpush1.msra.mxu0 0.0
        %971 = vmatprep.subr.mxu0 0.0
        %972 = vmatpush1.msra.mxu0 0.0
        %973 = vmatprep.subr.mxu0 0.0
        %974 = vmatpush1.msra.mxu0 0.0
        %975 = vmatprep.subr.mxu0 0.0
        %976 = vmatpush1.msra.mxu0 0.0
        %977 = vmatprep.subr.mxu0 0.0
        %978 = vmatpush1.msra.mxu0 0.0
        %979 = vmatprep.subr.mxu0 0.0
        %980 = vmatpush1.msra.mxu0 0.0
        %981 = vmatprep.subr.mxu0 0.0
        %982 = vmatpush1.msra.mxu0 0.0
        %983 = vmatprep.subr.mxu0 0.0
        %984 = vmatpush1.msra.mxu0 %v863
        %985 = vmatprep.subr.mxu0 0.0
        %986 = vmatpush1.msra.mxu0 %v862
        %987 = vmatprep.subr.mxu0 0.0
        %988 = vmatpush1.msra.mxu0 %v861
        %989 = vmatprep.subr.mxu0 0.0
        %990 = vmatpush1.msra.mxu0 %v860
        %991 = vmatprep.subr.mxu0 0.0
        %992 = vmatpush2.msra.mxu0 0.0
        %993 = vmatprep.subr.mxu0 0.0
        %994 = vmatpush2.msra.mxu0 0.0
        %995 = vmatprep.subr.mxu0 0.0
        %996 = vmatpush2.msra.mxu0 0.0
        %997 = vmatprep.subr.mxu0 0.0
        %998 = vmatpush2.msra.mxu0 0.0
        %999 = vmatprep.subr.mxu0 0.0
        %1000 = vmatpush2.msra.mxu0 0.0
        %1001 = vmatprep.subr.mxu0 0.0
        %1002 = vmatpush2.msra.mxu0 0.0
        %1003 = vmatprep.subr.mxu0 0.0
        %1004 = vmatpush2.msra.mxu0 0.0
        %1005 = vmatprep.subr.mxu0 0.0
        %1006 = vmatpush2.msra.mxu0 0.0
        %1007 = vmatprep.subr.mxu0 0.0
        %1008 = vmatpush2.msra.mxu0 0.0
        %1009 = vmatprep.subr.mxu0 0.0
        %1010 = vmatpush2.msra.mxu0 0.0
        %1011 = vmatprep.subr.mxu0 0.0
        %1012 = vmatpush2.msra.mxu0 0.0
        %1013 = vmatprep.subr.mxu0 0.0
        %1014 = vmatpush2.msra.mxu0 0.0
        %1015 = vmatprep.subr.mxu0 0.0
        %1016 = vmatpush2.msra.mxu0 0.0
        %1017 = vmatprep.subr.mxu0 0.0
        %1018 = vmatpush2.msra.mxu0 0.0
        %1019 = vmatprep.subr.mxu0 0.0
        %1020 = vmatpush2.msra.mxu0 0.0
        %1021 = vmatprep.subr.mxu0 0.0
        %1022 = vmatpush2.msra.mxu0 0.0
        %1023 = vmatprep.mubr.f32.mxu0 0.0
        %1024 = vmatmul.mubr.f32.gmra.mxu0 %v442
        %v1025 = vpop.f32.mrf.mxu0
        %v1026 = vadd.f32 %v957, %v1025
        %v1027 = vpop.f32.mrf.mxu0
        %1028 = vdwg.mxu0
        %v1030 = vsel %vm440, %v950, 0
        %v1033 = vsel %vm440, %v1026, 0
        %1035 = vmatprep.subr.mxu0 0.0
        %1036 = vmatpush1.xpose.msra.mxu0 0.0
        %1037 = vmatprep.subr.mxu0 0.0
        %1038 = vmatpush1.xpose.msra.mxu0 0.0
        %1039 = vmatprep.subr.mxu0 0.0
        %1040 = vmatpush1.xpose.msra.mxu0 0.0
        %1041 = vmatprep.subr.mxu0 0.0
        %1042 = vmatpush1.xpose.msra.mxu0 0.0
        %1043 = vmatprep.subr.mxu0 0.0
        %1044 = vmatpush1.xpose.msra.mxu0 0.0
        %1045 = vmatprep.subr.mxu0 0.0
        %1046 = vmatpush1.xpose.msra.mxu0 0.0
        %1047 = vmatprep.subr.mxu0 0.0
        %1048 = vmatpush1.xpose.msra.mxu0 0.0
        %1049 = vmatprep.subr.mxu0 0.0
        %1050 = vmatpush1.xpose.msra.mxu0 0.0
        %1051 = vmatprep.subr.mxu0 0.0
        %1052 = vmatpush1.xpose.msra.mxu0 0.0
        %1053 = vmatprep.subr.mxu0 0.0
        %1054 = vmatpush1.xpose.msra.mxu0 0.0
        %1055 = vmatprep.subr.mxu0 0.0
        %1056 = vmatpush1.xpose.msra.mxu0 0.0
        %1057 = vmatprep.subr.mxu0 0.0
        %1058 = vmatpush1.xpose.msra.mxu0 0.0
        %1059 = vmatprep.subr.mxu0 0.0
        %1060 = vmatpush1.xpose.msra.mxu0 0.0
        %1061 = vmatprep.subr.mxu0 0.0
        %1062 = vmatpush1.xpose.msra.mxu0 0.0
        %1063 = vmatprep.subr.mxu0 0.0
        %1064 = vmatpush1.xpose.msra.mxu0 0.0
        %1065 = vmatprep.subr.mxu0 0.0
        %1066 = vmatpush1.xpose.msra.mxu0 %v1033
        %1067 = vmatprep.subr.mxu0 0.0
        %1068 = vmatpush2.xpose.msra.mxu0 0.0
        %1069 = vmatprep.subr.mxu0 0.0
        %1070 = vmatpush2.xpose.msra.mxu0 0.0
        %1071 = vmatprep.subr.mxu0 0.0
        %1072 = vmatpush2.xpose.msra.mxu0 0.0
        %1073 = vmatprep.subr.mxu0 0.0
        %1074 = vmatpush2.xpose.msra.mxu0 0.0
        %1075 = vmatprep.subr.mxu0 0.0
        %1076 = vmatpush2.xpose.msra.mxu0 0.0
        %1077 = vmatprep.subr.mxu0 0.0
        %1078 = vmatpush2.xpose.msra.mxu0 0.0
        %1079 = vmatprep.subr.mxu0 0.0
        %1080 = vmatpush2.xpose.msra.mxu0 0.0
        %1081 = vmatprep.subr.mxu0 0.0
        %1082 = vmatpush2.xpose.msra.mxu0 0.0
        %1083 = vmatprep.subr.mxu0 0.0
        %1084 = vmatpush2.xpose.msra.mxu0 0.0
        %1085 = vmatprep.subr.mxu0 0.0
        %1086 = vmatpush2.xpose.msra.mxu0 0.0
        %1087 = vmatprep.subr.mxu0 0.0
        %1088 = vmatpush2.xpose.msra.mxu0 0.0
        %1089 = vmatprep.subr.mxu0 0.0
        %1090 = vmatpush2.xpose.msra.mxu0 0.0
        %1091 = vmatprep.subr.mxu0 0.0
        %1092 = vmatpush2.xpose.msra.mxu0 0.0
        %1093 = vmatprep.subr.mxu0 0.0
        %1094 = vmatpush2.xpose.msra.mxu0 0.0
        %1095 = vmatprep.subr.mxu0 0.0
        %1096 = vmatpush2.xpose.msra.mxu0 0.0
        %1097 = vmatprep.subr.mxu0 0.0
        %1098 = vmatpush2.xpose.msra.mxu0 0.0
        %1099 = vmatprep.mubr.f32.mxu0 0.0
        %1100 = vmatmul.mubr.f32.gmra.mxu0 %v1030
        %v1101 = vpop.f32.mrf.mxu0
        %v1102 = vadd.f32 0.0, %v1101
        %v1103 = vpop.f32.mrf.mxu0
        %1104 = vdwg.mxu0
        %v1105 = vsel %vm666, %v1102, -inf
        %1106 = vmax.xlane.f32.xlu0 %v1105
        %v1107 = vpop.xlane.xlu0 %1106
        %v1108 = vsub.f32 %v1102, %v1107
        %v1109 = vmul.f32 %v1108, 1.442695
        %v1110 = vpow.pop %v1109
        %v1111 = vsel %vm666, %v1110, 0.0
        %1112 = vadd.xlane.f32.xlu0 %v1111
        %v1113 = vpop.xlane.xlu0 %1112
        %v1114 = vrcp.pop %v1113
        %v1115 = vmul.f32 %v1110, %v1114
        %v1117 = vsel %vm666, %v1115, 0
        %1119 = vmatprep.subr.mxu0 0.0
        %1120 = vmatpush1.msra.mxu0 0.0
        %1121 = vmatprep.subr.mxu0 0.0
        %1122 = vmatpush1.msra.mxu0 0.0
        %1123 = vmatprep.subr.mxu0 0.0
        %1124 = vmatpush1.msra.mxu0 0.0
        %1125 = vmatprep.subr.mxu0 0.0
        %1126 = vmatpush1.msra.mxu0 0.0
        %1127 = vmatprep.subr.mxu0 0.0
        %1128 = vmatpush1.msra.mxu0 0.0
        %1129 = vmatprep.subr.mxu0 0.0
        %1130 = vmatpush1.msra.mxu0 0.0
        %1131 = vmatprep.subr.mxu0 0.0
        %1132 = vmatpush1.msra.mxu0 0.0
        %1133 = vmatprep.subr.mxu0 0.0
        %1134 = vmatpush1.msra.mxu0 0.0
        %1135 = vmatprep.subr.mxu0 0.0
        %1136 = vmatpush1.msra.mxu0 0.0
        %1137 = vmatprep.subr.mxu0 0.0
        %1138 = vmatpush1.msra.mxu0 0.0
        %1139 = vmatprep.subr.mxu0 0.0
        %1140 = vmatpush1.msra.mxu0 0.0
        %1141 = vmatprep.subr.mxu0 0.0
        %1142 = vmatpush1.msra.mxu0 0.0
        %1143 = vmatprep.subr.mxu0 0.0
        %1144 = vmatpush1.msra.mxu0 0.0
        %1145 = vmatprep.subr.mxu0 0.0
        %1146 = vmatpush1.msra.mxu0 0.0
        %1147 = vmatprep.subr.mxu0 0.0
        %1148 = vmatpush1.msra.mxu0 0.0
        %1149 = vmatprep.subr.mxu0 0.0
        %1150 = vmatpush1.msra.mxu0 %v417
        %1151 = vmatprep.subr.mxu0 0.0
        %1152 = vmatpush2.msra.mxu0 0.0
        %1153 = vmatprep.subr.mxu0 0.0
        %1154 = vmatpush2.msra.mxu0 0.0
        %1155 = vmatprep.subr.mxu0 0.0
        %1156 = vmatpush2.msra.mxu0 0.0
        %1157 = vmatprep.subr.mxu0 0.0
        %1158 = vmatpush2.msra.mxu0 0.0
        %1159 = vmatprep.subr.mxu0 0.0
        %1160 = vmatpush2.msra.mxu0 0.0
        %1161 = vmatprep.subr.mxu0 0.0
        %1162 = vmatpush2.msra.mxu0 0.0
        %1163 = vmatprep.subr.mxu0 0.0
        %1164 = vmatpush2.msra.mxu0 0.0
        %1165 = vmatprep.subr.mxu0 0.0
        %1166 = vmatpush2.msra.mxu0 0.0
        %1167 = vmatprep.subr.mxu0 0.0
        %1168 = vmatpush2.msra.mxu0 0.0
        %1169 = vmatprep.subr.mxu0 0.0
        %1170 = vmatpush2.msra.mxu0 0.0
        %1171 = vmatprep.subr.mxu0 0.0
        %1172 = vmatpush2.msra.mxu0 0.0
        %1173 = vmatprep.subr.mxu0 0.0
        %1174 = vmatpush2.msra.mxu0 0.0
        %1175 = vmatprep.subr.mxu0 0.0
        %1176 = vmatpush2.msra.mxu0 0.0
        %1177 = vmatprep.subr.mxu0 0.0
        %1178 = vmatpush2.msra.mxu0 0.0
        %1179 = vmatprep.subr.mxu0 0.0
        %1180 = vmatpush2.msra.mxu0 0.0
        %1181 = vmatprep.subr.mxu0 0.0
        %1182 = vmatpush2.msra.mxu0 0.0
        %1183 = vmatprep.mubr.f32.mxu0 0.0
        %1184 = vmatmul.mubr.f32.gmra.mxu0 %v1117
        %v1185 = vpop.f32.mrf.mxu0
        %v1186 = vadd.f32 0.0, %v1185
        %v1187 = vpop.f32.mrf.mxu0
        %1188 = vdwg.mxu0
        %v1190 = vsel %vm440, %v1186, 0
        %1192 = vmatprep.subr.mxu0 0.0
        %1193 = vmatpush1.msra.mxu0 0.0
        %1194 = vmatprep.subr.mxu0 0.0
        %1195 = vmatpush1.msra.mxu0 0.0
        %1196 = vmatprep.subr.mxu0 0.0
        %1197 = vmatpush1.msra.mxu0 0.0
        %1198 = vmatprep.subr.mxu0 0.0
        %1199 = vmatpush1.msra.mxu0 0.0
        %1200 = vmatprep.subr.mxu0 0.0
        %1201 = vmatpush1.msra.mxu0 0.0
        %1202 = vmatprep.subr.mxu0 0.0
        %1203 = vmatpush1.msra.mxu0 0.0
        %1204 = vmatprep.subr.mxu0 0.0
        %1205 = vmatpush1.msra.mxu0 0.0
        %1206 = vmatprep.subr.mxu0 0.0
        %1207 = vmatpush1.msra.mxu0 0.0
        %1208 = vmatprep.subr.mxu0 0.0
        %1209 = vmatpush1.msra.mxu0 0.0
        %1210 = vmatprep.subr.mxu0 0.0
        %1211 = vmatpush1.msra.mxu0 0.0
        %1212 = vmatprep.subr.mxu0 0.0
        %1213 = vmatpush1.msra.mxu0 0.0
        %1214 = vmatprep.subr.mxu0 0.0
        %1215 = vmatpush1.msra.mxu0 0.0
        %1216 = vmatprep.subr.mxu0 0.0
        %1217 = vmatpush1.msra.mxu0 %v868
        %1218 = vmatprep.subr.mxu0 0.0
        %1219 = vmatpush1.msra.mxu0 %v867
        %1220 = vmatprep.subr.mxu0 0.0
        %1221 = vmatpush1.msra.mxu0 %v866
        %1222 = vmatprep.subr.mxu0 0.0
        %1223 = vmatpush1.msra.mxu0 %v865
        %1224 = vmatprep.subr.mxu0 0.0
        %1225 = vmatpush2.msra.mxu0 0.0
        %1226 = vmatprep.subr.mxu0 0.0
        %1227 = vmatpush2.msra.mxu0 0.0
        %1228 = vmatprep.subr.mxu0 0.0
        %1229 = vmatpush2.msra.mxu0 0.0
        %1230 = vmatprep.subr.mxu0 0.0
        %1231 = vmatpush2.msra.mxu0 0.0
        %1232 = vmatprep.subr.mxu0 0.0
        %1233 = vmatpush2.msra.mxu0 0.0
        %1234 = vmatprep.subr.mxu0 0.0
        %1235 = vmatpush2.msra.mxu0 0.0
        %1236 = vmatprep.subr.mxu0 0.0
        %1237 = vmatpush2.msra.mxu0 0.0
        %1238 = vmatprep.subr.mxu0 0.0
        %1239 = vmatpush2.msra.mxu0 0.0
        %1240 = vmatprep.subr.mxu0 0.0
        %1241 = vmatpush2.msra.mxu0 0.0
        %1242 = vmatprep.subr.mxu0 0.0
        %1243 = vmatpush2.msra.mxu0 0.0
        %1244 = vmatprep.subr.mxu0 0.0
        %1245 = vmatpush2.msra.mxu0 0.0
        %1246 = vmatprep.subr.mxu0 0.0
        %1247 = vmatpush2.msra.mxu0 0.0
        %1248 = vmatprep.subr.mxu0 0.0
        %1249 = vmatpush2.msra.mxu0 0.0
        %1250 = vmatprep.subr.mxu0 0.0
        %1251 = vmatpush2.msra.mxu0 0.0
        %1252 = vmatprep.subr.mxu0 0.0
        %1253 = vmatpush2.msra.mxu0 0.0
        %1254 = vmatprep.subr.mxu0 0.0
        %1255 = vmatpush2.msra.mxu0 0.0
        %1256 = vmatprep.mubr.f32.mxu0 0.0
        %1257 = vmatmul.mubr.f32.gmra.mxu0 %v1190
        %v1258 = vpop.f32.mrf.mxu0
        %v1259 = vadd.f32 0.0, %v1258
        %v1260 = vpop.f32.mrf.mxu0
        %1261 = vdwg.mxu0
        %v1262 = vsel %vm440, %v1259, 0.0
        %1263 = vadd.xlane.f32.xlu0 %v1262
        %v1264 = vpop.xlane.xlu0 %1263
        %v1265 = vmul.f32 %v1264, %v827
        %v1266 = vsub.f32 %v1259, %v1265
        %v1267 = vmul.f32 %v1266, %v1266
        %v1268 = vsel %vm440, %v1267, 0.0
        %1269 = vadd.xlane.f32.xlu0 %v1268
        %v1270 = vpop.xlane.xlu0 %1269
        %v1271 = vmul.f32 %v1270, %v827
        %v1272 = vadd.f32 %v1271, 1e-05
        %v1273 = vrsqrt.pop %v1272
        %v1274 = vmul.f32 %v1266, %v1273
        %v1276 = vlaneseq
        %v1277 = vshrl.u32 %v1276, 7
        %v1278 = vsub.s32 0, %v1277
        %v1279 = vrot.slane %v874, %v1278
        %v1281 = vmul.f32 %v1274, %v1279
        %v1283 = vlaneseq
        %v1284 = vshrl.u32 %v1283, 7
        %v1285 = vsub.s32 0, %v1284
        %v1286 = vrot.slane %v876, %v1285
        %v1288 = vadd.f32 %v1281, %v1286
        %v1289 = vmax.f32 %v1288, 0.0
        %v1290 = vadd.f32 %v853, %v1289
        %s1291 = scalar_lea.vmem [#allocation5], 64
        %v1292 = vld [vmem:[%s1291] sm:$0xff]
        %v1293 = vld [vmem:[%s1291 + $0x8] sm:$0xff]
        %v1294 = vld [vmem:[%s1291 + $0x10] sm:$0xff]
        %v1295 = vld [vmem:[%s1291 + $0x18] sm:$0xff]
        %s1296 = scalar_lea.vmem [#allocation8], 64
        %v1297 = vld [vmem:[%s1296] sm:$0xff]
        %v1298 = vld [vmem:[%s1296 + $0x8] sm:$0xff]
        %v1299 = vld [vmem:[%s1296 + $0x10] sm:$0xff]
        %v1300 = vld [vmem:[%s1296 + $0x18] sm:$0xff]
        %s1301 = scalar_lea.vmem [#allocation10], 64
        %v1302 = vld [vmem:[%s1301] sm:$0xff]
        %v1303 = vld [vmem:[%s1301 + $0x8] sm:$0xff]
        %v1304 = vld [vmem:[%s1301 + $0x10] sm:$0xff]
        %v1305 = vld [vmem:[%s1301 + $0x18] sm:$0xff]
        %s1306 = scalar_lea.vmem [#allocation7], 2
        %v1307 = vld [vmem:[%s1306] sm:$0x1]
        %s1308 = scalar_lea.vmem %s4, 2
        %v1309 = vld [vmem:[%s1308] sm:$0x1]
        %s1310 = scalar_lea.vmem %s6, 2
        %v1311 = vld [vmem:[%s1310] sm:$0x1]
        %s1312 = scalar_lea.vmem %s7, 2
        %v1313 = vld [vmem:[%s1312] sm:$0x1]
        %v1315 = vlaneseq
        %v1316 = vshrl.u32 %v1315, 7
        %v1317 = vsub.s32 0, %v1316
        %v1318 = vrot.slane %v1307, %v1317
        %1320 = vmatprep.subr.mxu0 0.0
        %1321 = vmatpush1.msra.mxu0 0.0
        %1322 = vmatprep.subr.mxu0 0.0
        %1323 = vmatpush1.msra.mxu0 0.0
        %1324 = vmatprep.subr.mxu0 0.0
        %1325 = vmatpush1.msra.mxu0 0.0
        %1326 = vmatprep.subr.mxu0 0.0
        %1327 = vmatpush1.msra.mxu0 0.0
        %1328 = vmatprep.subr.mxu0 0.0
        %1329 = vmatpush1.msra.mxu0 0.0
        %1330 = vmatprep.subr.mxu0 0.0
        %1331 = vmatpush1.msra.mxu0 0.0
        %1332 = vmatprep.subr.mxu0 0.0
        %1333 = vmatpush1.msra.mxu0 0.0
        %1334 = vmatprep.subr.mxu0 0.0
        %1335 = vmatpush1.msra.mxu0 0.0
        %1336 = vmatprep.subr.mxu0 0.0
        %1337 = vmatpush1.msra.mxu0 0.0
        %1338 = vmatprep.subr.mxu0 0.0
        %1339 = vmatpush1.msra.mxu0 0.0
        %1340 = vmatprep.subr.mxu0 0.0
        %1341 = vmatpush1.msra.mxu0 0.0
        %1342 = vmatprep.subr.mxu0 0.0
        %1343 = vmatpush1.msra.mxu0 0.0
        %1344 = vmatprep.subr.mxu0 0.0
        %1345 = vmatpush1.msra.mxu0 %v1295
        %1346 = vmatprep.subr.mxu0 0.0
        %1347 = vmatpush1.msra.mxu0 %v1294
        %1348 = vmatprep.subr.mxu0 0.0
        %1349 = vmatpush1.msra.mxu0 %v1293
        %1350 = vmatprep.subr.mxu0 0.0
        %1351 = vmatpush1.msra.mxu0 %v1292
        %1352 = vmatprep.subr.mxu0 0.0
        %1353 = vmatpush2.msra.mxu0 0.0
        %1354 = vmatprep.subr.mxu0 0.0
        %1355 = vmatpush2.msra.mxu0 0.0
        %1356 = vmatprep.subr.mxu0 0.0
        %1357 = vmatpush2.msra.mxu0 0.0
        %1358 = vmatprep.subr.mxu0 0.0
        %1359 = vmatpush2.msra.mxu0 0.0
        %1360 = vmatprep.subr.mxu0 0.0
        %1361 = vmatpush2.msra.mxu0 0.0
        %1362 = vmatprep.subr.mxu0 0.0
        %1363 = vmatpush2.msra.mxu0 0.0
        %1364 = vmatprep.subr.mxu0 0.0
        %1365 = vmatpush2.msra.mxu0 0.0
        %1366 = vmatprep.subr.mxu0 0.0
        %1367 = vmatpush2.msra.mxu0 0.0
        %1368 = vmatprep.subr.mxu0 0.0
        %1369 = vmatpush2.msra.mxu0 0.0
        %1370 = vmatprep.subr.mxu0 0.0
        %1371 = vmatpush2.msra.mxu0 0.0
        %1372 = vmatprep.subr.mxu0 0.0
        %1373 = vmatpush2.msra.mxu0 0.0
        %1374 = vmatprep.subr.mxu0 0.0
        %1375 = vmatpush2.msra.mxu0 0.0
        %1376 = vmatprep.subr.mxu0 0.0
        %1377 = vmatpush2.msra.mxu0 0.0
        %1378 = vmatprep.subr.mxu0 0.0
        %1379 = vmatpush2.msra.mxu0 0.0
        %1380 = vmatprep.subr.mxu0 0.0
        %1381 = vmatpush2.msra.mxu0 0.0
        %1382 = vmatprep.subr.mxu0 0.0
        %1383 = vmatpush2.msra.mxu0 0.0
        %1384 = vmatprep.mubr.f32.mxu0 0.0
        %1385 = vmatmul.mubr.f32.gmra.mxu0 %v442
        %v1386 = vpop.f32.mrf.mxu0
        %v1387 = vadd.f32 %v1318, %v1386
        %v1388 = vpop.f32.mrf.mxu0
        %1389 = vdwg.mxu0
        %v1391 = vlaneseq
        %v1392 = vshrl.u32 %v1391, 7
        %v1393 = vsub.s32 0, %v1392
        %v1394 = vrot.slane %v1309, %v1393
        %1396 = vmatprep.subr.mxu0 0.0
        %1397 = vmatpush1.msra.mxu0 0.0
        %1398 = vmatprep.subr.mxu0 0.0
        %1399 = vmatpush1.msra.mxu0 0.0
        %1400 = vmatprep.subr.mxu0 0.0
        %1401 = vmatpush1.msra.mxu0 0.0
        %1402 = vmatprep.subr.mxu0 0.0
        %1403 = vmatpush1.msra.mxu0 0.0
        %1404 = vmatprep.subr.mxu0 0.0
        %1405 = vmatpush1.msra.mxu0 0.0
        %1406 = vmatprep.subr.mxu0 0.0
        %1407 = vmatpush1.msra.mxu0 0.0
        %1408 = vmatprep.subr.mxu0 0.0
        %1409 = vmatpush1.msra.mxu0 0.0
        %1410 = vmatprep.subr.mxu0 0.0
        %1411 = vmatpush1.msra.mxu0 0.0
        %1412 = vmatprep.subr.mxu0 0.0
        %1413 = vmatpush1.msra.mxu0 0.0
        %1414 = vmatprep.subr.mxu0 0.0
        %1415 = vmatpush1.msra.mxu0 0.0
        %1416 = vmatprep.subr.mxu0 0.0
        %1417 = vmatpush1.msra.mxu0 0.0
        %1418 = vmatprep.subr.mxu0 0.0
        %1419 = vmatpush1.msra.mxu0 0.0
        %1420 = vmatprep.subr.mxu0 0.0
        %1421 = vmatpush1.msra.mxu0 %v1300
        %1422 = vmatprep.subr.mxu0 0.0
        %1423 = vmatpush1.msra.mxu0 %v1299
        %1424 = vmatprep.subr.mxu0 0.0
        %1425 = vmatpush1.msra.mxu0 %v1298
        %1426 = vmatprep.subr.mxu0 0.0
        %1427 = vmatpush1.msra.mxu0 %v1297
        %1428 = vmatprep.subr.mxu0 0.0
        %1429 = vmatpush2.msra.mxu0 0.0
        %1430 = vmatprep.subr.mxu0 0.0
        %1431 = vmatpush2.msra.mxu0 0.0
        %1432 = vmatprep.subr.mxu0 0.0
        %1433 = vmatpush2.msra.mxu0 0.0
        %1434 = vmatprep.subr.mxu0 0.0
        %1435 = vmatpush2.msra.mxu0 0.0
        %1436 = vmatprep.subr.mxu0 0.0
        %1437 = vmatpush2.msra.mxu0 0.0
        %1438 = vmatprep.subr.mxu0 0.0
        %1439 = vmatpush2.msra.mxu0 0.0
        %1440 = vmatprep.subr.mxu0 0.0
        %1441 = vmatpush2.msra.mxu0 0.0
        %1442 = vmatprep.subr.mxu0 0.0
        %1443 = vmatpush2.msra.mxu0 0.0
        %1444 = vmatprep.subr.mxu0 0.0
        %1445 = vmatpush2.msra.mxu0 0.0
        %1446 = vmatprep.subr.mxu0 0.0
        %1447 = vmatpush2.msra.mxu0 0.0
        %1448 = vmatprep.subr.mxu0 0.0
        %1449 = vmatpush2.msra.mxu0 0.0
        %1450 = vmatprep.subr.mxu0 0.0
        %1451 = vmatpush2.msra.mxu0 0.0
        %1452 = vmatprep.subr.mxu0 0.0
        %1453 = vmatpush2.msra.mxu0 0.0
        %1454 = vmatprep.subr.mxu0 0.0
        %1455 = vmatpush2.msra.mxu0 0.0
        %1456 = vmatprep.subr.mxu0 0.0
        %1457 = vmatpush2.msra.mxu0 0.0
        %1458 = vmatprep.subr.mxu0 0.0
        %1459 = vmatpush2.msra.mxu0 0.0
        %1460 = vmatprep.mubr.f32.mxu0 0.0
        %1461 = vmatmul.mubr.f32.gmra.mxu0 %v442
        %v1462 = vpop.f32.mrf.mxu0
        %v1463 = vadd.f32 %v1394, %v1462
        %v1464 = vpop.f32.mrf.mxu0
        %1465 = vdwg.mxu0
        %v1467 = vsel %vm440, %v1387, 0
        %v1470 = vsel %vm440, %v1463, 0
        %1472 = vmatprep.subr.mxu0 0.0
        %1473 = vmatpush1.xpose.msra.mxu0 0.0
        %1474 = vmatprep.subr.mxu0 0.0
        %1475 = vmatpush1.xpose.msra.mxu0 0.0
        %1476 = vmatprep.subr.mxu0 0.0
        %1477 = vmatpush1.xpose.msra.mxu0 0.0
        %1478 = vmatprep.subr.mxu0 0.0
        %1479 = vmatpush1.xpose.msra.mxu0 0.0
        %1480 = vmatprep.subr.mxu0 0.0
        %1481 = vmatpush1.xpose.msra.mxu0 0.0
        %1482 = vmatprep.subr.mxu0 0.0
        %1483 = vmatpush1.xpose.msra.mxu0 0.0
        %1484 = vmatprep.subr.mxu0 0.0
        %1485 = vmatpush1.xpose.msra.mxu0 0.0
        %1486 = vmatprep.subr.mxu0 0.0
        %1487 = vmatpush1.xpose.msra.mxu0 0.0
        %1488 = vmatprep.subr.mxu0 0.0
        %1489 = vmatpush1.xpose.msra.mxu0 0.0
        %1490 = vmatprep.subr.mxu0 0.0
        %1491 = vmatpush1.xpose.msra.mxu0 0.0
        %1492 = vmatprep.subr.mxu0 0.0
        %1493 = vmatpush1.xpose.msra.mxu0 0.0
        %1494 = vmatprep.subr.mxu0 0.0
        %1495 = vmatpush1.xpose.msra.mxu0 0.0
        %1496 = vmatprep.subr.mxu0 0.0
        %1497 = vmatpush1.xpose.msra.mxu0 0.0
        %1498 = vmatprep.subr.mxu0 0.0
        %1499 = vmatpush1.xpose.msra.mxu0 0.0
        %1500 = vmatprep.subr.mxu0 0.0
        %1501 = vmatpush1.xpose.msra.mxu0 0.0
        %1502 = vmatprep.subr.mxu0 0.0
        %1503 = vmatpush1.xpose.msra.mxu0 %v1470
        %1504 = vmatprep.subr.mxu0 0.0
        %1505 = vmatpush2.xpose.msra.mxu0 0.0
        %1506 = vmatprep.subr.mxu0 0.0
        %1507 = vmatpush2.xpose.msra.mxu0 0.0
        %1508 = vmatprep.subr.mxu0 0.0
        %1509 = vmatpush2.xpose.msra.mxu0 0.0
        %1510 = vmatprep.subr.mxu0 0.0
        %1511 = vmatpush2.xpose.msra.mxu0 0.0
        %1512 = vmatprep.subr.mxu0 0.0
        %1513 = vmatpush2.xpose.msra.mxu0 0.0
        %1514 = vmatprep.subr.mxu0 0.0
        %1515 = vmatpush2.xpose.msra.mxu0 0.0
        %1516 = vmatprep.subr.mxu0 0.0
        %1517 = vmatpush2.xpose.msra.mxu0 0.0
        %1518 = vmatprep.subr.mxu0 0.0
        %1519 = vmatpush2.xpose.msra.mxu0 0.0
        %1520 = vmatprep.subr.mxu0 0.0
        %1521 = vmatpush2.xpose.msra.mxu0 0.0
        %1522 = vmatprep.subr.mxu0 0.0
        %1523 = vmatpush2.xpose.msra.mxu0 0.0
        %1524 = vmatprep.subr.mxu0 0.0
        %1525 = vmatpush2.xpose.msra.mxu0 0.0
        %1526 = vmatprep.subr.mxu0 0.0
        %1527 = vmatpush2.xpose.msra.mxu0 0.0
        %1528 = vmatprep.subr.mxu0 0.0
        %1529 = vmatpush2.xpose.msra.mxu0 0.0
        %1530 = vmatprep.subr.mxu0 0.0
        %1531 = vmatpush2.xpose.msra.mxu0 0.0
        %1532 = vmatprep.subr.mxu0 0.0
        %1533 = vmatpush2.xpose.msra.mxu0 0.0
        %1534 = vmatprep.subr.mxu0 0.0
        %1535 = vmatpush2.xpose.msra.mxu0 0.0
        %1536 = vmatprep.mubr.f32.mxu0 0.0
        %1537 = vmatmul.mubr.f32.gmra.mxu0 %v1467
        %v1538 = vpop.f32.mrf.mxu0
        %v1539 = vadd.f32 0.0, %v1538
        %v1540 = vpop.f32.mrf.mxu0
        %1541 = vdwg.mxu0
        %v1542 = vsel %vm666, %v1539, -inf
        %1543 = vmax.xlane.f32.xlu0 %v1542
        %v1544 = vpop.xlane.xlu0 %1543
        %v1545 = vsub.f32 %v1539, %v1544
        %v1546 = vmul.f32 %v1545, 1.442695
        %v1547 = vpow.pop %v1546
        %v1548 = vsel %vm666, %v1547, 0.0
        %1549 = vadd.xlane.f32.xlu0 %v1548
        %v1550 = vpop.xlane.xlu0 %1549
        %v1551 = vrcp.pop %v1550
        %v1552 = vmul.f32 %v1547, %v1551
        %v1554 = vsel %vm666, %v1552, 0
        %1556 = vmatprep.subr.mxu0 0.0
        %1557 = vmatpush1.msra.mxu0 0.0
        %1558 = vmatprep.subr.mxu0 0.0
        %1559 = vmatpush1.msra.mxu0 0.0
        %1560 = vmatprep.subr.mxu0 0.0
        %1561 = vmatpush1.msra.mxu0 0.0
        %1562 = vmatprep.subr.mxu0 0.0
        %1563 = vmatpush1.msra.mxu0 0.0
        %1564 = vmatprep.subr.mxu0 0.0
        %1565 = vmatpush1.msra.mxu0 0.0
        %1566 = vmatprep.subr.mxu0 0.0
        %1567 = vmatpush1.msra.mxu0 0.0
        %1568 = vmatprep.subr.mxu0 0.0
        %1569 = vmatpush1.msra.mxu0 0.0
        %1570 = vmatprep.subr.mxu0 0.0
        %1571 = vmatpush1.msra.mxu0 0.0
        %1572 = vmatprep.subr.mxu0 0.0
        %1573 = vmatpush1.msra.mxu0 0.0
        %1574 = vmatprep.subr.mxu0 0.0
        %1575 = vmatpush1.msra.mxu0 0.0
        %1576 = vmatprep.subr.mxu0 0.0
        %1577 = vmatpush1.msra.mxu0 0.0
        %1578 = vmatprep.subr.mxu0 0.0
        %1579 = vmatpush1.msra.mxu0 0.0
        %1580 = vmatprep.subr.mxu0 0.0
        %1581 = vmatpush1.msra.mxu0 0.0
        %1582 = vmatprep.subr.mxu0 0.0
        %1583 = vmatpush1.msra.mxu0 0.0
        %1584 = vmatprep.subr.mxu0 0.0
        %1585 = vmatpush1.msra.mxu0 0.0
        %1586 = vmatprep.subr.mxu0 0.0
        %1587 = vmatpush1.msra.mxu0 %v417
        %1588 = vmatprep.subr.mxu0 0.0
        %1589 = vmatpush2.msra.mxu0 0.0
        %1590 = vmatprep.subr.mxu0 0.0
        %1591 = vmatpush2.msra.mxu0 0.0
        %1592 = vmatprep.subr.mxu0 0.0
        %1593 = vmatpush2.msra.mxu0 0.0
        %1594 = vmatprep.subr.mxu0 0.0
        %1595 = vmatpush2.msra.mxu0 0.0
        %1596 = vmatprep.subr.mxu0 0.0
        %1597 = vmatpush2.msra.mxu0 0.0
        %1598 = vmatprep.subr.mxu0 0.0
        %1599 = vmatpush2.msra.mxu0 0.0
        %1600 = vmatprep.subr.mxu0 0.0
        %1601 = vmatpush2.msra.mxu0 0.0
        %1602 = vmatprep.subr.mxu0 0.0
        %1603 = vmatpush2.msra.mxu0 0.0
        %1604 = vmatprep.subr.mxu0 0.0
        %1605 = vmatpush2.msra.mxu0 0.0
        %1606 = vmatprep.subr.mxu0 0.0
        %1607 = vmatpush2.msra.mxu0 0.0
        %1608 = vmatprep.subr.mxu0 0.0
        %1609 = vmatpush2.msra.mxu0 0.0
        %1610 = vmatprep.subr.mxu0 0.0
        %1611 = vmatpush2.msra.mxu0 0.0
        %1612 = vmatprep.subr.mxu0 0.0
        %1613 = vmatpush2.msra.mxu0 0.0
        %1614 = vmatprep.subr.mxu0 0.0
        %1615 = vmatpush2.msra.mxu0 0.0
        %1616 = vmatprep.subr.mxu0 0.0
        %1617 = vmatpush2.msra.mxu0 0.0
        %1618 = vmatprep.subr.mxu0 0.0
        %1619 = vmatpush2.msra.mxu0 0.0
        %1620 = vmatprep.mubr.f32.mxu0 0.0
        %1621 = vmatmul.mubr.f32.gmra.mxu0 %v1554
        %v1622 = vpop.f32.mrf.mxu0
        %v1623 = vadd.f32 0.0, %v1622
        %v1624 = vpop.f32.mrf.mxu0
        %1625 = vdwg.mxu0
        %v1627 = vsel %vm440, %v1623, 0
        %1629 = vmatprep.subr.mxu0 0.0
        %1630 = vmatpush1.msra.mxu0 0.0
        %1631 = vmatprep.subr.mxu0 0.0
        %1632 = vmatpush1.msra.mxu0 0.0
        %1633 = vmatprep.subr.mxu0 0.0
        %1634 = vmatpush1.msra.mxu0 0.0
        %1635 = vmatprep.subr.mxu0 0.0
        %1636 = vmatpush1.msra.mxu0 0.0
        %1637 = vmatprep.subr.mxu0 0.0
        %1638 = vmatpush1.msra.mxu0 0.0
        %1639 = vmatprep.subr.mxu0 0.0
        %1640 = vmatpush1.msra.mxu0 0.0
        %1641 = vmatprep.subr.mxu0 0.0
        %1642 = vmatpush1.msra.mxu0 0.0
        %1643 = vmatprep.subr.mxu0 0.0
        %1644 = vmatpush1.msra.mxu0 0.0
        %1645 = vmatprep.subr.mxu0 0.0
        %1646 = vmatpush1.msra.mxu0 0.0
        %1647 = vmatprep.subr.mxu0 0.0
        %1648 = vmatpush1.msra.mxu0 0.0
        %1649 = vmatprep.subr.mxu0 0.0
        %1650 = vmatpush1.msra.mxu0 0.0
        %1651 = vmatprep.subr.mxu0 0.0
        %1652 = vmatpush1.msra.mxu0 0.0
        %1653 = vmatprep.subr.mxu0 0.0
        %1654 = vmatpush1.msra.mxu0 %v1305
        %1655 = vmatprep.subr.mxu0 0.0
        %1656 = vmatpush1.msra.mxu0 %v1304
        %1657 = vmatprep.subr.mxu0 0.0
        %1658 = vmatpush1.msra.mxu0 %v1303
        %1659 = vmatprep.subr.mxu0 0.0
        %1660 = vmatpush1.msra.mxu0 %v1302
        %1661 = vmatprep.subr.mxu0 0.0
        %1662 = vmatpush2.msra.mxu0 0.0
        %1663 = vmatprep.subr.mxu0 0.0
        %1664 = vmatpush2.msra.mxu0 0.0
        %1665 = vmatprep.subr.mxu0 0.0
        %1666 = vmatpush2.msra.mxu0 0.0
        %1667 = vmatprep.subr.mxu0 0.0
        %1668 = vmatpush2.msra.mxu0 0.0
        %1669 = vmatprep.subr.mxu0 0.0
        %1670 = vmatpush2.msra.mxu0 0.0
        %1671 = vmatprep.subr.mxu0 0.0
        %1672 = vmatpush2.msra.mxu0 0.0
        %1673 = vmatprep.subr.mxu0 0.0
        %1674 = vmatpush2.msra.mxu0 0.0
        %1675 = vmatprep.subr.mxu0 0.0
        %1676 = vmatpush2.msra.mxu0 0.0
        %1677 = vmatprep.subr.mxu0 0.0
        %1678 = vmatpush2.msra.mxu0 0.0
        %1679 = vmatprep.subr.mxu0 0.0
        %1680 = vmatpush2.msra.mxu0 0.0
        %1681 = vmatprep.subr.mxu0 0.0
        %1682 = vmatpush2.msra.mxu0 0.0
        %1683 = vmatprep.subr.mxu0 0.0
        %1684 = vmatpush2.msra.mxu0 0.0
        %1685 = vmatprep.subr.mxu0 0.0
        %1686 = vmatpush2.msra.mxu0 0.0
        %1687 = vmatprep.subr.mxu0 0.0
        %1688 = vmatpush2.msra.mxu0 0.0
        %1689 = vmatprep.subr.mxu0 0.0
        %1690 = vmatpush2.msra.mxu0 0.0
        %1691 = vmatprep.subr.mxu0 0.0
        %1692 = vmatpush2.msra.mxu0 0.0
        %1693 = vmatprep.mubr.f32.mxu0 0.0
        %1694 = vmatmul.mubr.f32.gmra.mxu0 %v1627
        %v1695 = vpop.f32.mrf.mxu0
        %v1696 = vadd.f32 0.0, %v1695
        %v1697 = vpop.f32.mrf.mxu0
        %1698 = vdwg.mxu0
        %v1699 = vsel %vm440, %v1696, 0.0
        %1700 = vadd.xlane.f32.xlu0 %v1699
        %v1701 = vpop.xlane.xlu0 %1700
        %v1702 = vmul.f32 %v1701, %v827
        %v1703 = vsub.f32 %v1696, %v1702
        %v1704 = vmul.f32 %v1703, %v1703
        %v1705 = vsel %vm440, %v1704, 0.0
        %1706 = vadd.xlane.f32.xlu0 %v1705
        %v1707 = vpop.xlane.xlu0 %1706
        %v1708 = vmul.f32 %v1707, %v827
        %v1709 = vadd.f32 %v1708, 1e-05
        %v1710 = vrsqrt.pop %v1709
        %v1711 = vmul.f32 %v1703, %v1710
        %v1713 = vlaneseq
        %v1714 = vshrl.u32 %v1713, 7
        %v1715 = vsub.s32 0, %v1714
        %v1716 = vrot.slane %v1311, %v1715
        %v1718 = vmul.f32 %v1711, %v1716
        %v1720 = vlaneseq
        %v1721 = vshrl.u32 %v1720, 7
        %v1722 = vsub.s32 0, %v1721
        %v1723 = vrot.slane %v1313, %v1722
        %v1725 = vadd.f32 %v1718, %v1723
        %v1726 = vmax.f32 %v1725, 0.0
        %v1727 = vadd.f32 %v1290, %v1726
        %s1728 = scalar_lea.vmem [#allocation5], 96
        %v1729 = vld [vmem:[%s1728] sm:$0xff]
        %v1730 = vld [vmem:[%s1728 + $0x8] sm:$0xff]
        %v1731 = vld [vmem:[%s1728 + $0x10] sm:$0xff]
        %v1732 = vld [vmem:[%s1728 + $0x18] sm:$0xff]
        %s1733 = scalar_lea.vmem [#allocation8], 96
        %v1734 = vld [vmem:[%s1733] sm:$0xff]
        %v1735 = vld [vmem:[%s1733 + $0x8] sm:$0xff]
        %v1736 = vld [vmem:[%s1733 + $0x10] sm:$0xff]
        %v1737 = vld [vmem:[%s1733 + $0x18] sm:$0xff]
        %s1738 = scalar_lea.vmem [#allocation10], 96
        %v1739 = vld [vmem:[%s1738] sm:$0xff]
        %v1740 = vld [vmem:[%s1738 + $0x8] sm:$0xff]
        %v1741 = vld [vmem:[%s1738 + $0x10] sm:$0xff]
        %v1742 = vld [vmem:[%s1738 + $0x18] sm:$0xff]
        %s1743 = scalar_lea.vmem [#allocation7], 3
        %v1744 = vld [vmem:[%s1743] sm:$0x1]
        %s1745 = scalar_lea.vmem %s4, 3
        %v1746 = vld [vmem:[%s1745] sm:$0x1]
        %s1747 = scalar_lea.vmem %s6, 3
        %v1748 = vld [vmem:[%s1747] sm:$0x1]
        %s1749 = scalar_lea.vmem %s7, 3
        %v1750 = vld [vmem:[%s1749] sm:$0x1]
        %v1752 = vlaneseq
        %v1753 = vshrl.u32 %v1752, 7
        %v1754 = vsub.s32 0, %v1753
        %v1755 = vrot.slane %v1744, %v1754
        %1757 = vmatprep.subr.mxu0 0.0
        %1758 = vmatpush1.msra.mxu0 0.0
        %1759 = vmatprep.subr.mxu0 0.0
        %1760 = vmatpush1.msra.mxu0 0.0
        %1761 = vmatprep.subr.mxu0 0.0
        %1762 = vmatpush1.msra.mxu0 0.0
        %1763 = vmatprep.subr.mxu0 0.0
        %1764 = vmatpush1.msra.mxu0 0.0
        %1765 = vmatprep.subr.mxu0 0.0
        %1766 = vmatpush1.msra.mxu0 0.0
        %1767 = vmatprep.subr.mxu0 0.0
        %1768 = vmatpush1.msra.mxu0 0.0
        %1769 = vmatprep.subr.mxu0 0.0
        %1770 = vmatpush1.msra.mxu0 0.0
        %1771 = vmatprep.subr.mxu0 0.0
        %1772 = vmatpush1.msra.mxu0 0.0
        %1773 = vmatprep.subr.mxu0 0.0
        %1774 = vmatpush1.msra.mxu0 0.0
        %1775 = vmatprep.subr.mxu0 0.0
        %1776 = vmatpush1.msra.mxu0 0.0
        %1777 = vmatprep.subr.mxu0 0.0
        %1778 = vmatpush1.msra.mxu0 0.0
        %1779 = vmatprep.subr.mxu0 0.0
        %1780 = vmatpush1.msra.mxu0 0.0
        %1781 = vmatprep.subr.mxu0 0.0
        %1782 = vmatpush1.msra.mxu0 %v1732
        %1783 = vmatprep.subr.mxu0 0.0
        %1784 = vmatpush1.msra.mxu0 %v1731
        %1785 = vmatprep.subr.mxu0 0.0
        %1786 = vmatpush1.msra.mxu0 %v1730
        %1787 = vmatprep.subr.mxu0 0.0
        %1788 = vmatpush1.msra.mxu0 %v1729
        %1789 = vmatprep.subr.mxu0 0.0
        %1790 = vmatpush2.msra.mxu0 0.0
        %1791 = vmatprep.subr.mxu0 0.0
        %1792 = vmatpush2.msra.mxu0 0.0
        %1793 = vmatprep.subr.mxu0 0.0
        %1794 = vmatpush2.msra.mxu0 0.0
        %1795 = vmatprep.subr.mxu0 0.0
        %1796 = vmatpush2.msra.mxu0 0.0
        %1797 = vmatprep.subr.mxu0 0.0
        %1798 = vmatpush2.msra.mxu0 0.0
        %1799 = vmatprep.subr.mxu0 0.0
        %1800 = vmatpush2.msra.mxu0 0.0
        %1801 = vmatprep.subr.mxu0 0.0
        %1802 = vmatpush2.msra.mxu0 0.0
        %1803 = vmatprep.subr.mxu0 0.0
        %1804 = vmatpush2.msra.mxu0 0.0
        %1805 = vmatprep.subr.mxu0 0.0
        %1806 = vmatpush2.msra.mxu0 0.0
        %1807 = vmatprep.subr.mxu0 0.0
        %1808 = vmatpush2.msra.mxu0 0.0
        %1809 = vmatprep.subr.mxu0 0.0
        %1810 = vmatpush2.msra.mxu0 0.0
        %1811 = vmatprep.subr.mxu0 0.0
        %1812 = vmatpush2.msra.mxu0 0.0
        %1813 = vmatprep.subr.mxu0 0.0
        %1814 = vmatpush2.msra.mxu0 0.0
        %1815 = vmatprep.subr.mxu0 0.0
        %1816 = vmatpush2.msra.mxu0 0.0
        %1817 = vmatprep.subr.mxu0 0.0
        %1818 = vmatpush2.msra.mxu0 0.0
        %1819 = vmatprep.subr.mxu0 0.0
        %1820 = vmatpush2.msra.mxu0 0.0
        %1821 = vmatprep.mubr.f32.mxu0 0.0
        %1822 = vmatmul.mubr.f32.gmra.mxu0 %v442
        %v1823 = vpop.f32.mrf.mxu0
        %v1824 = vadd.f32 %v1755, %v1823
        %v1825 = vpop.f32.mrf.mxu0
        %1826 = vdwg.mxu0
        %v1828 = vlaneseq
        %v1829 = vshrl.u32 %v1828, 7
        %v1830 = vsub.s32 0, %v1829
        %v1831 = vrot.slane %v1746, %v1830
        %1833 = vmatprep.subr.mxu0 0.0
        %1834 = vmatpush1.msra.mxu0 0.0
        %1835 = vmatprep.subr.mxu0 0.0
        %1836 = vmatpush1.msra.mxu0 0.0
        %1837 = vmatprep.subr.mxu0 0.0
        %1838 = vmatpush1.msra.mxu0 0.0
        %1839 = vmatprep.subr.mxu0 0.0
        %1840 = vmatpush1.msra.mxu0 0.0
        %1841 = vmatprep.subr.mxu0 0.0
        %1842 = vmatpush1.msra.mxu0 0.0
        %1843 = vmatprep.subr.mxu0 0.0
        %1844 = vmatpush1.msra.mxu0 0.0
        %1845 = vmatprep.subr.mxu0 0.0
        %1846 = vmatpush1.msra.mxu0 0.0
        %1847 = vmatprep.subr.mxu0 0.0
        %1848 = vmatpush1.msra.mxu0 0.0
        %1849 = vmatprep.subr.mxu0 0.0
        %1850 = vmatpush1.msra.mxu0 0.0
        %1851 = vmatprep.subr.mxu0 0.0
        %1852 = vmatpush1.msra.mxu0 0.0
        %1853 = vmatprep.subr.mxu0 0.0
        %1854 = vmatpush1.msra.mxu0 0.0
        %1855 = vmatprep.subr.mxu0 0.0
        %1856 = vmatpush1.msra.mxu0 0.0
        %1857 = vmatprep.subr.mxu0 0.0
        %1858 = vmatpush1.msra.mxu0 %v1737
        %1859 = vmatprep.subr.mxu0 0.0
        %1860 = vmatpush1.msra.mxu0 %v1736
        %1861 = vmatprep.subr.mxu0 0.0
        %1862 = vmatpush1.msra.mxu0 %v1735
        %1863 = vmatprep.subr.mxu0 0.0
        %1864 = vmatpush1.msra.mxu0 %v1734
        %1865 = vmatprep.subr.mxu0 0.0
        %1866 = vmatpush2.msra.mxu0 0.0
        %1867 = vmatprep.subr.mxu0 0.0
        %1868 = vmatpush2.msra.mxu0 0.0
        %1869 = vmatprep.subr.mxu0 0.0
        %1870 = vmatpush2.msra.mxu0 0.0
        %1871 = vmatprep.subr.mxu0 0.0
        %1872 = vmatpush2.msra.mxu0 0.0
        %1873 = vmatprep.subr.mxu0 0.0
        %1874 = vmatpush2.msra.mxu0 0.0
        %1875 = vmatprep.subr.mxu0 0.0
        %1876 = vmatpush2.msra.mxu0 0.0
        %1877 = vmatprep.subr.mxu0 0.0
        %1878 = vmatpush2.msra.mxu0 0.0
        %1879 = vmatprep.subr.mxu0 0.0
        %1880 = vmatpush2.msra.mxu0 0.0
        %1881 = vmatprep.subr.mxu0 0.0
        %1882 = vmatpush2.msra.mxu0 0.0
        %1883 = vmatprep.subr.mxu0 0.0
        %1884 = vmatpush2.msra.mxu0 0.0
        %1885 = vmatprep.subr.mxu0 0.0
        %1886 = vmatpush2.msra.mxu0 0.0
        %1887 = vmatprep.subr.mxu0 0.0
        %1888 = vmatpush2.msra.mxu0 0.0
        %1889 = vmatprep.subr.mxu0 0.0
        %1890 = vmatpush2.msra.mxu0 0.0
        %1891 = vmatprep.subr.mxu0 0.0
        %1892 = vmatpush2.msra.mxu0 0.0
        %1893 = vmatprep.subr.mxu0 0.0
        %1894 = vmatpush2.msra.mxu0 0.0
        %1895 = vmatprep.subr.mxu0 0.0
        %1896 = vmatpush2.msra.mxu0 0.0
        %1897 = vmatprep.mubr.f32.mxu0 0.0
        %1898 = vmatmul.mubr.f32.gmra.mxu0 %v442
        %v1899 = vpop.f32.mrf.mxu0
        %v1900 = vadd.f32 %v1831, %v1899
        %v1901 = vpop.f32.mrf.mxu0
        %1902 = vdwg.mxu0
        %v1904 = vsel %vm440, %v1824, 0
        %v1907 = vsel %vm440, %v1900, 0
        %1909 = vmatprep.subr.mxu0 0.0
        %1910 = vmatpush1.xpose.msra.mxu0 0.0
        %1911 = vmatprep.subr.mxu0 0.0
        %1912 = vmatpush1.xpose.msra.mxu0 0.0
        %1913 = vmatprep.subr.mxu0 0.0
        %1914 = vmatpush1.xpose.msra.mxu0 0.0
        %1915 = vmatprep.subr.mxu0 0.0
        %1916 = vmatpush1.xpose.msra.mxu0 0.0
        %1917 = vmatprep.subr.mxu0 0.0
        %1918 = vmatpush1.xpose.msra.mxu0 0.0
        %1919 = vmatprep.subr.mxu0 0.0
        %1920 = vmatpush1.xpose.msra.mxu0 0.0
        %1921 = vmatprep.subr.mxu0 0.0
        %1922 = vmatpush1.xpose.msra.mxu0 0.0
        %1923 = vmatprep.subr.mxu0 0.0
        %1924 = vmatpush1.xpose.msra.mxu0 0.0
        %1925 = vmatprep.subr.mxu0 0.0
        %1926 = vmatpush1.xpose.msra.mxu0 0.0
        %1927 = vmatprep.subr.mxu0 0.0
        %1928 = vmatpush1.xpose.msra.mxu0 0.0
        %1929 = vmatprep.subr.mxu0 0.0
        %1930 = vmatpush1.xpose.msra.mxu0 0.0
        %1931 = vmatprep.subr.mxu0 0.0
        %1932 = vmatpush1.xpose.msra.mxu0 0.0
        %1933 = vmatprep.subr.mxu0 0.0
        %1934 = vmatpush1.xpose.msra.mxu0 0.0
        %1935 = vmatprep.subr.mxu0 0.0
        %1936 = vmatpush1.xpose.msra.mxu0 0.0
        %1937 = vmatprep.subr.mxu0 0.0
        %1938 = vmatpush1.xpose.msra.mxu0 0.0
        %1939 = vmatprep.subr.mxu0 0.0
        %1940 = vmatpush1.xpose.msra.mxu0 %v1907
        %1941 = vmatprep.subr.mxu0 0.0
        %1942 = vmatpush2.xpose.msra.mxu0 0.0
        %1943 = vmatprep.subr.mxu0 0.0
        %1944 = vmatpush2.xpose.msra.mxu0 0.0
        %1945 = vmatprep.subr.mxu0 0.0
        %1946 = vmatpush2.xpose.msra.mxu0 0.0
        %1947 = vmatprep.subr.mxu0 0.0
        %1948 = vmatpush2.xpose.msra.mxu0 0.0
        %1949 = vmatprep.subr.mxu0 0.0
        %1950 = vmatpush2.xpose.msra.mxu0 0.0
        %1951 = vmatprep.subr.mxu0 0.0
        %1952 = vmatpush2.xpose.msra.mxu0 0.0
        %1953 = vmatprep.subr.mxu0 0.0
        %1954 = vmatpush2.xpose.msra.mxu0 0.0
        %1955 = vmatprep.subr.mxu0 0.0
        %1956 = vmatpush2.xpose.msra.mxu0 0.0
        %1957 = vmatprep.subr.mxu0 0.0
        %1958 = vmatpush2.xpose.msra.mxu0 0.0
        %1959 = vmatprep.subr.mxu0 0.0
        %1960 = vmatpush2.xpose.msra.mxu0 0.0
        %1961 = vmatprep.subr.mxu0 0.0
        %1962 = vmatpush2.xpose.msra.mxu0 0.0
        %1963 = vmatprep.subr.mxu0 0.0
        %1964 = vmatpush2.xpose.msra.mxu0 0.0
        %1965 = vmatprep.subr.mxu0 0.0
        %1966 = vmatpush2.xpose.msra.mxu0 0.0
        %1967 = vmatprep.subr.mxu0 0.0
        %1968 = vmatpush2.xpose.msra.mxu0 0.0
        %1969 = vmatprep.subr.mxu0 0.0
        %1970 = vmatpush2.xpose.msra.mxu0 0.0
        %1971 = vmatprep.subr.mxu0 0.0
        %1972 = vmatpush2.xpose.msra.mxu0 0.0
        %1973 = vmatprep.mubr.f32.mxu0 0.0
        %1974 = vmatmul.mubr.f32.gmra.mxu0 %v1904
        %v1975 = vpop.f32.mrf.mxu0
        %v1976 = vadd.f32 0.0, %v1975
        %v1977 = vpop.f32.mrf.mxu0
        %1978 = vdwg.mxu0
        %v1979 = vsel %vm666, %v1976, -inf
        %1980 = vmax.xlane.f32.xlu0 %v1979
        %v1981 = vpop.xlane.xlu0 %1980
        %v1982 = vsub.f32 %v1976, %v1981
        %v1983 = vmul.f32 %v1982, 1.442695
        %v1984 = vpow.pop %v1983
        %v1985 = vsel %vm666, %v1984, 0.0
        %1986 = vadd.xlane.f32.xlu0 %v1985
        %v1987 = vpop.xlane.xlu0 %1986
        %v1988 = vrcp.pop %v1987
        %v1989 = vmul.f32 %v1984, %v1988
        %v1991 = vsel %vm666, %v1989, 0
        %1993 = vmatprep.subr.mxu0 0.0
        %1994 = vmatpush1.msra.mxu0 0.0
        %1995 = vmatprep.subr.mxu0 0.0
        %1996 = vmatpush1.msra.mxu0 0.0
        %1997 = vmatprep.subr.mxu0 0.0
        %1998 = vmatpush1.msra.mxu0 0.0
        %1999 = vmatprep.subr.mxu0 0.0
        %2000 = vmatpush1.msra.mxu0 0.0
        %2001 = vmatprep.subr.mxu0 0.0
        %2002 = vmatpush1.msra.mxu0 0.0
        %2003 = vmatprep.subr.mxu0 0.0
        %2004 = vmatpush1.msra.mxu0 0.0
        %2005 = vmatprep.subr.mxu0 0.0
        %2006 = vmatpush1.msra.mxu0 0.0
        %2007 = vmatprep.subr.mxu0 0.0
        %2008 = vmatpush1.msra.mxu0 0.0
        %2009 = vmatprep.subr.mxu0 0.0
        %2010 = vmatpush1.msra.mxu0 0.0
        %2011 = vmatprep.subr.mxu0 0.0
        %2012 = vmatpush1.msra.mxu0 0.0
        %2013 = vmatprep.subr.mxu0 0.0
        %2014 = vmatpush1.msra.mxu0 0.0
        %2015 = vmatprep.subr.mxu0 0.0
        %2016 = vmatpush1.msra.mxu0 0.0
        %2017 = vmatprep.subr.mxu0 0.0
        %2018 = vmatpush1.msra.mxu0 0.0
        %2019 = vmatprep.subr.mxu0 0.0
        %2020 = vmatpush1.msra.mxu0 0.0
        %2021 = vmatprep.subr.mxu0 0.0
        %2022 = vmatpush1.msra.mxu0 0.0
        %2023 = vmatprep.subr.mxu0 0.0
        %2024 = vmatpush1.msra.mxu0 %v417
        %2025 = vmatprep.subr.mxu0 0.0
        %2026 = vmatpush2.msra.mxu0 0.0
        %2027 = vmatprep.subr.mxu0 0.0
        %2028 = vmatpush2.msra.mxu0 0.0
        %2029 = vmatprep.subr.mxu0 0.0
        %2030 = vmatpush2.msra.mxu0 0.0
        %2031 = vmatprep.subr.mxu0 0.0
        %2032 = vmatpush2.msra.mxu0 0.0
        %2033 = vmatprep.subr.mxu0 0.0
        %2034 = vmatpush2.msra.mxu0 0.0
        %2035 = vmatprep.subr.mxu0 0.0
        %2036 = vmatpush2.msra.mxu0 0.0
        %2037 = vmatprep.subr.mxu0 0.0
        %2038 = vmatpush2.msra.mxu0 0.0
        %2039 = vmatprep.subr.mxu0 0.0
        %2040 = vmatpush2.msra.mxu0 0.0
        %2041 = vmatprep.subr.mxu0 0.0
        %2042 = vmatpush2.msra.mxu0 0.0
        %2043 = vmatprep.subr.mxu0 0.0
        %2044 = vmatpush2.msra.mxu0 0.0
        %2045 = vmatprep.subr.mxu0 0.0
        %2046 = vmatpush2.msra.mxu0 0.0
        %2047 = vmatprep.subr.mxu0 0.0
        %2048 = vmatpush2.msra.mxu0 0.0
        %2049 = vmatprep.subr.mxu0 0.0
        %2050 = vmatpush2.msra.mxu0 0.0
        %2051 = vmatprep.subr.mxu0 0.0
        %2052 = vmatpush2.msra.mxu0 0.0
        %2053 = vmatprep.subr.mxu0 0.0
        %2054 = vmatpush2.msra.mxu0 0.0
        %2055 = vmatprep.subr.mxu0 0.0
        %2056 = vmatpush2.msra.mxu0 0.0
        %2057 = vmatprep.mubr.f32.mxu0 0.0
        %2058 = vmatmul.mubr.f32.gmra.mxu0 %v1991
        %v2059 = vpop.f32.mrf.mxu0
        %v2060 = vadd.f32 0.0, %v2059
        %v2061 = vpop.f32.mrf.mxu0
        %2062 = vdwg.mxu0
        %v2064 = vsel %vm440, %v2060, 0
        %2066 = vmatprep.subr.mxu0 0.0
        %2067 = vmatpush1.msra.mxu0 0.0
        %2068 = vmatprep.subr.mxu0 0.0
        %2069 = vmatpush1.msra.mxu0 0.0
        %2070 = vmatprep.subr.mxu0 0.0
        %2071 = vmatpush1.msra.mxu0 0.0
        %2072 = vmatprep.subr.mxu0 0.0
        %2073 = vmatpush1.msra.mxu0 0.0
        %2074 = vmatprep.subr.mxu0 0.0
        %2075 = vmatpush1.msra.mxu0 0.0
        %2076 = vmatprep.subr.mxu0 0.0
        %2077 = vmatpush1.msra.mxu0 0.0
        %2078 = vmatprep.subr.mxu0 0.0
        %2079 = vmatpush1.msra.mxu0 0.0
        %2080 = vmatprep.subr.mxu0 0.0
        %2081 = vmatpush1.msra.mxu0 0.0
        %2082 = vmatprep.subr.mxu0 0.0
        %2083 = vmatpush1.msra.mxu0 0.0
        %2084 = vmatprep.subr.mxu0 0.0
        %2085 = vmatpush1.msra.mxu0 0.0
        %2086 = vmatprep.subr.mxu0 0.0
        %2087 = vmatpush1.msra.mxu0 0.0
        %2088 = vmatprep.subr.mxu0 0.0
        %2089 = vmatpush1.msra.mxu0 0.0
        %2090 = vmatprep.subr.mxu0 0.0
        %2091 = vmatpush1.msra.mxu0 %v1742
        %2092 = vmatprep.subr.mxu0 0.0
        %2093 = vmatpush1.msra.mxu0 %v1741
        %2094 = vmatprep.subr.mxu0 0.0
        %2095 = vmatpush1.msra.mxu0 %v1740
        %2096 = vmatprep.subr.mxu0 0.0
        %2097 = vmatpush1.msra.mxu0 %v1739
        %2098 = vmatprep.subr.mxu0 0.0
        %2099 = vmatpush2.msra.mxu0 0.0
        %2100 = vmatprep.subr.mxu0 0.0
        %2101 = vmatpush2.msra.mxu0 0.0
        %2102 = vmatprep.subr.mxu0 0.0
        %2103 = vmatpush2.msra.mxu0 0.0
        %2104 = vmatprep.subr.mxu0 0.0
        %2105 = vmatpush2.msra.mxu0 0.0
        %2106 = vmatprep.subr.mxu0 0.0
        %2107 = vmatpush2.msra.mxu0 0.0
        %2108 = vmatprep.subr.mxu0 0.0
        %2109 = vmatpush2.msra.mxu0 0.0
        %2110 = vmatprep.subr.mxu0 0.0
        %2111 = vmatpush2.msra.mxu0 0.0
        %2112 = vmatprep.subr.mxu0 0.0
        %2113 = vmatpush2.msra.mxu0 0.0
        %2114 = vmatprep.subr.mxu0 0.0
        %2115 = vmatpush2.msra.mxu0 0.0
        %2116 = vmatprep.subr.mxu0 0.0
        %2117 = vmatpush2.msra.mxu0 0.0
        %2118 = vmatprep.subr.mxu0 0.0
        %2119 = vmatpush2.msra.mxu0 0.0
        %2120 = vmatprep.subr.mxu0 0.0
        %2121 = vmatpush2.msra.mxu0 0.0
        %2122 = vmatprep.subr.mxu0 0.0
        %2123 = vmatpush2.msra.mxu0 0.0
        %2124 = vmatprep.subr.mxu0 0.0
        %2125 = vmatpush2.msra.mxu0 0.0
        %2126 = vmatprep.subr.mxu0 0.0
        %2127 = vmatpush2.msra.mxu0 0.0
        %2128 = vmatprep.subr.mxu0 0.0
        %2129 = vmatpush2.msra.mxu0 0.0
        %2130 = vmatprep.mubr.f32.mxu0 0.0
        %2131 = vmatmul.mubr.f32.gmra.mxu0 %v2064
        %v2132 = vpop.f32.mrf.mxu0
        %v2133 = vadd.f32 0.0, %v2132
        %v2134 = vpop.f32.mrf.mxu0
        %2135 = vdwg.mxu0
        %v2136 = vsel %vm440, %v2133, 0.0
        %2137 = vadd.xlane.f32.xlu0 %v2136
        %v2138 = vpop.xlane.xlu0 %2137
        %v2139 = vmul.f32 %v2138, %v827
        %v2140 = vsub.f32 %v2133, %v2139
        %v2141 = vmul.f32 %v2140, %v2140
        %v2142 = vsel %vm440, %v2141, 0.0
        %2143 = vadd.xlane.f32.xlu0 %v2142
        %v2144 = vpop.xlane.xlu0 %2143
        %v2145 = vmul.f32 %v2144, %v827
        %v2146 = vadd.f32 %v2145, 1e-05
        %v2147 = vrsqrt.pop %v2146
        %v2148 = vmul.f32 %v2140, %v2147
        %v2150 = vlaneseq
        %v2151 = vshrl.u32 %v2150, 7
        %v2152 = vsub.s32 0, %v2151
        %v2153 = vrot.slane %v1748, %v2152
        %v2155 = vmul.f32 %v2148, %v2153
        %v2157 = vlaneseq
        %v2158 = vshrl.u32 %v2157, 7
        %v2159 = vsub.s32 0, %v2158
        %v2160 = vrot.slane %v1750, %v2159
        %v2162 = vadd.f32 %v2155, %v2160
        %v2163 = vmax.f32 %v2162, 0.0
        %v2164 = vadd.f32 %v1727, %v2163
        %2165 = vst.msk [vmem:[%s409] sm:$0xff] %vm440, %v2164
        %2166 = vst.msk [vmem:[%s416] sm:$0xff] %vm666, %v1989
        %s2167 = sand.u32 %s213, 1
        %s2168 = scalar_lea.sflag [#allocation4], %s2167
        %s2169 = sand.u32 %s213, 1
        %s2170 = smul.addr %s2169, 8
        %s2171 = scalar_lea.vmem [#allocation11], %s2170
        %s2172 = sand.u32 %s239, 1
        %s2173 = scalar_lea.sflag [#allocation13], %s2172
        %s2174 = sand.u32 %s239, 1
        %s2175 = smul.addr %s2174, 8
        %s2176 = scalar_lea.vmem [#allocation12], %s2175
        // Predicated region
        $region73: #{tpu_custom_call.1} parent=51 // pred_check
          %p2177 = pneg %p223
        $region74: #{tpu_custom_call.1} parent=51 // pred_check_branch
          %2179 = sbr.rel (%p2177) target = $region76
        $region75: #{tpu_custom_call.1} parent=51 // pred_region
          %s2181 = ssub.s32 128, 128
          %2182 = vsyncadd %s2168, %s2181
          %s2183 = smul.addr %s32, 128
          %s2184 = scalar_lea.hbm %s8, %s2183
          %s2186 = sshll.u32 %s2171, 4
          %s2187 = int_to_ptr.vmem [resolvable:$true] %s2186
          %2189 = dma.vmem_to_hbm [thread:$0]  %s2187, 128, %s2184, %s2168
        $region76: #{tpu_custom_call.1} parent=51 // pred_fallthru
          _
        // Predicated region
        $region77: #{tpu_custom_call.1} parent=51 // pred_check
          %p2190 = pneg %p249
        $region78: #{tpu_custom_call.1} parent=51 // pred_check_branch
          %2192 = sbr.rel (%p2190) target = $region80
        $region79: #{tpu_custom_call.1} parent=51 // pred_region
          %s2194 = ssub.s32 128, 128
          %2195 = vsyncadd %s2173, %s2194
          %s2196 = smul.addr %s32, 128
          %s2197 = scalar_lea.hbm %s9, %s2196
          %s2199 = sshll.u32 %s2176, 4
          %s2200 = int_to_ptr.vmem [resolvable:$true] %s2199
          %2202 = dma.vmem_to_hbm [thread:$0]  %s2200, 128, %s2197, %s2173
        $region80: #{tpu_custom_call.1} parent=51 // pred_fallthru
          _
      $region52: #{tpu_custom_call.1} parent=5 // pred_fallthru
        _
      %p2203 = scmp.le.s32.totalorder 2, %s27
      // Predicated region
      $region81: #{tpu_custom_call.1} parent=5 // pred_check
        %p2204 = pneg %p2203
      $region82: #{tpu_custom_call.1} parent=5 // pred_check_branch
        %2206 = sbr.rel (%p2204) target = $region84
      $region83: #{tpu_custom_call.1} parent=5 // pred_region
        %s2207 = ssub.s32 %s27, 2
        // Predicated region
        $region85: #{tpu_custom_call.1} parent=83 // pred_check
          %p2208 = pneg %p229
        $region86: #{tpu_custom_call.1} parent=83 // pred_check_branch
          %2210 = sbr.rel (%p2208) target = $region88
        $region87: #{tpu_custom_call.1} parent=83 // pred_region
          %s2211 = sand.u32 %s214, 1
          %s2212 = scalar_lea.sflag [#allocation4], %s2211
          %s2213 = sand.u32 %s214, 1
          %s2214 = smul.addr %s2213, 8
          %s2215 = scalar_lea.vmem [#allocation11], %s2214
          %2216 = dma.done %s2212, 128
        $region88: #{tpu_custom_call.1} parent=83 // pred_fallthru
          _
        // Predicated region
        $region89: #{tpu_custom_call.1} parent=83 // pred_check
          %p2217 = pneg %p255
        $region90: #{tpu_custom_call.1} parent=83 // pred_check_branch
          %2219 = sbr.rel (%p2217) target = $region92
        $region91: #{tpu_custom_call.1} parent=83 // pred_region
          %s2220 = sand.u32 %s240, 1
          %s2221 = scalar_lea.sflag [#allocation13], %s2220
          %s2222 = sand.u32 %s240, 1
          %s2223 = smul.addr %s2222, 8
          %s2224 = scalar_lea.vmem [#allocation12], %s2223
          %2225 = dma.done %s2221, 128
        $region92: #{tpu_custom_call.1} parent=83 // pred_fallthru
          _
      $region84: #{tpu_custom_call.1} parent=5 // pred_fallthru
        _
    $region6: #{tpu_custom_call.1} parent=1 // loop_footer
      %s31 = sadd.s32 1, %s27
    $region7: #{tpu_custom_call.1} parent=1 // loop_footer_branch
      %26 = sbr.rel target = $region3
    $region8: #{tpu_custom_call.1} parent=1 // loop_exit
      _
    %2226 = vsyncpa [#allocation3], 1
    %s2227 = scalar_lea.sflag [#allocation3], 1
    %2228 = vsyncpa %s2227, 1
    %2229 = vsyncpa [#allocation6], 1
    %2230 = vsyncpa [#allocation9], 1
    %2231 = vsyncpa [#allocation4], 1
    %s2232 = scalar_lea.sflag [#allocation4], 1
    %2233 = vsyncpa %s2232, 1
    %2234 = vsyncpa [#allocation13], 1
    %s2235 = scalar_lea.sflag [#allocation13], 1
    %2236 = vsyncpa %s2235, 1

</llo_original>
